<compile_context>
chip_gen: v7x
topology: tpu7x:2x2x1
jax: 0.10.0
libtpu: 0.0.40
codegen_flags: <defaults>
</compile_context>

<pallas_src>
import jax
import jax.numpy as jnp
import numpy as np
from jax.experimental import pallas as pl
from jax.experimental.pallas import tpu as pltpu

EPS = 1e-5

# ---- fixed geometry for this module instantiation ---------------------------
N_IMG = 2                       # batch
C_IN, C_MID, C_OUT = 4, 8, 8
H = W = 16
H1, W1 = H - 2, W - 2           # 14x14 after conv1 (valid 3x3)
H2, W2 = H - 4, W - 4           # 12x12 after conv2

C_PAD = 8                       # channel (sublane) padding: Cin 4 -> 8
IMG_SLOT = 512                  # per-image flat slot (power of two; 32 rows x 16 cols)
L_OUT = N_IMG * IMG_SLOT        # 1024: conv2 output flat length (8 x 128 lanes)
L_MID = L_OUT + 128             # 1152: conv1 output flat length (covers tap shift <= 34)
L_IN = L_MID + 128              # 1280: padded input flat length (covers tap shift <= 34)

SHIFTS = tuple(kh * W + kw for kh in range(3) for kw in range(3))   # 3x3 tap offsets
K_STACK = 9 * C_PAD             # 72: stacked contraction dim


# ------------------------------- kernel --------------------------------------
def convblock_kernel(x_ref, w_ref, bn_ref, o_ref):
    """x_ref : (C_PAD, L_IN)   f32  channel-major, row-strided flat spatial
       w_ref : (16, K_STACK)   f32  rows 0-7: conv1 LHS (Cmid x 9*Cin_pad)
                                    rows 8-15: conv2 LHS (Cout x 9*Cmid)
       bn_ref: (C_PAD, 8)      f32  columns [g1, g2, be2, g3, be3, 0, 0, 0]
       o_ref : (C_PAD, L_OUT)  f32
    """
    x = x_ref[...]
    w1_lhs = w_ref[0:C_PAD, :]            # (8, 72)
    w2_lhs = w_ref[C_PAD:2 * C_PAD, :]    # (8, 72)

    def conv3x3(inp, out_len, w_lhs):
        # Valid 3x3 conv on the row-strided flat layout: sublane-stack the 9
        # shifted tap slices into a (72, out_len) RHS and do ONE MXU matmul.
        rhs = jnp.concatenate([inp[:, s:s + out_len] for s in SHIFTS], axis=0)
        return jnp.dot(w_lhs, rhs, preferred_element_type=jnp.float32)

    def valid_mask(length, rows, cols):
        # 1.0 at lanes holding a real (image, row, col) output position.
        p = jax.lax.broadcasted_iota(jnp.int32, (1, length), 1)
        r = p & (IMG_SLOT - 1)                       # position within image slot
        ok = ((r >> 4) < rows) & ((r & (W - 1)) < cols) & (p < N_IMG * IMG_SLOT)
        return ok.astype(jnp.float32)

    def masked_stats(v, mask, count):
        # One-pass masked mean / biased variance per channel, with a SINGLE
        # lane-axis reduction over the sublane-stacked [vm ; vm*vm] array.
        # TODO(synk): switch to two-pass variance if scaled up / bf16-ified.
        vm = v * mask
        stacked = jnp.concatenate([vm, vm * vm], axis=0)        # (16, L)
        sums = jnp.sum(stacked, axis=1, keepdims=True)          # one XLU pass
        inv = 1.0 / count
        mean = sums[0:C_PAD] * inv
        ex2 = sums[C_PAD:2 * C_PAD] * inv
        return mean, ex2 - mean * mean

    g1 = bn_ref[:, 0:1]
    g2 = bn_ref[:, 1:2]
    be2 = bn_ref[:, 2:3]
    g3 = bn_ref[:, 3:4]
    be3 = bn_ref[:, 4:5]

    # ---- conv1 (bias dropped: cancelled by the batch-mean subtraction) ------
    y = conv3x3(x, L_MID, w1_lhs)

    # ---- BN o BN collapsed into one normalize + affine (exact algebra) ------
    #   z  = (y-m)/sqrt(v+eps)*g1 + be1  has mean be1 and var g1^2*v/(v+eps),
    #   so BN2(BN1(y)) = (y-m) * s1*g2*rsqrt(s1^2*v+eps) + be2, s1=g1*rsqrt(v+eps)
    m1, v1 = masked_stats(y, valid_mask(L_MID, H1, W1), N_IMG * H1 * W1)
    s1 = g1 * jax.lax.rsqrt(v1 + EPS)
    scale12 = s1 * g2 * jax.lax.rsqrt(s1 * s1 * v1 + EPS)
    y = jnp.maximum((y - m1) * scale12 + be2, 0.0)

    # ---- conv2 + BN + ReLU ---------------------------------------------------
    z = conv3x3(y, L_OUT, w2_lhs)
    m2, v2 = masked_stats(z, valid_mask(L_OUT, H2, W2), N_IMG * H2 * W2)
    z = jnp.maximum((z - m2) * (g3 * jax.lax.rsqrt(v2 + EPS)) + be3, 0.0)

    o_ref[...] = z                                    # lane-dense (8, 1024) store


# ------------------------------- wrapper --------------------------------------
def _pack_activations(x_nhwc):
    # (N,H,W,Cin) -> (C_PAD, L_IN): channels on sublanes, flat row-strided spatial.
    x = jnp.transpose(x_nhwc, (3, 0, 1, 2))                        # (Cin, N, H, W)
    x = jnp.pad(x, ((0, C_PAD - C_IN), (0, 0), (0, IMG_SLOT // W - H), (0, 0)))
    x = x.reshape(C_PAD, N_IMG * IMG_SLOT)
    return jnp.pad(x, ((0, 0), (0, L_IN - N_IMG * IMG_SLOT)))


def _pack_weights(w1, w2):
    # HWIO -> per-tap (Cout, Cin) matrices padded to (8,8), lane-concatenated
    # into one stacked-K LHS per conv, then sublane-stacked into a (16,72) slab:
    #   slab[0:8,  t*8:(t+1)*8] = conv1 tap-t matrix   (Cmid x Cin_pad)
    #   slab[8:16, t*8:(t+1)*8] = conv2 tap-t matrix   (Cout x Cmid)
    w1t = jnp.transpose(w1, (0, 1, 3, 2)).reshape(9, C_MID, C_IN)
    w1t = jnp.pad(w1t, ((0, 0), (0, C_PAD - C_MID), (0, C_PAD - C_IN)))
    w1_slab = jnp.transpose(w1t, (1, 0, 2)).reshape(C_PAD, K_STACK)
    w2t = jnp.transpose(w2, (0, 1, 3, 2)).reshape(9, C_OUT, C_MID)
    w2t = jnp.pad(w2t, ((0, 0), (0, C_PAD - C_OUT), (0, C_PAD - C_MID)))
    w2_slab = jnp.transpose(w2t, (1, 0, 2)).reshape(C_PAD, K_STACK)
    return jnp.concatenate([w1_slab, w2_slab], axis=0)             # (16, 72)


def _pack_bn(g1, g2, be2, g3, be3):
    cols = jnp.stack([v.reshape(-1) for v in (g1, g2, be2, g3, be3)], axis=1)
    return jnp.pad(cols, ((0, C_PAD - cols.shape[0]), (0, 8 - cols.shape[1])))


@jax.jit
def convblock_forward(x_nchw, params):
    """x_nchw: (N, Cin, H, W) like the PyTorch module.
    params = (w1, b1, g1, be1, g2, be2, w2, b2, g3, be3); conv weights in HWIO.

    b1, b2 (conv biases) and be1 (first BN shift) cancel exactly under the
    training-mode batch-mean subtraction that follows them, so they are not
    shipped to the kernel.
    """
    w1, b1, g1, be1, g2, be2, w2, b2, g3, be3 = params
    del b1, be1, b2

    x_nhwc = jnp.transpose(x_nchw, (0, 2, 3, 1))
    x_packed = _pack_activations(x_nhwc)
    w_packed = _pack_weights(w1, w2)
    bn_packed = _pack_bn(g1, g2, be2, g3, be3)

    vmem = pl.BlockSpec(memory_space=pltpu.MemorySpace.VMEM)
    out = pl.pallas_call(
        convblock_kernel,
        out_shape=jax.ShapeDtypeStruct((C_PAD, L_OUT), jnp.float32),
        in_specs=[vmem, vmem, vmem],
        out_specs=vmem,
    )(x_packed, w_packed, bn_packed)

    out = out.reshape(C_PAD, N_IMG, IMG_SLOT // W, W)[:C_OUT, :, :H2, :W2]
    return jnp.transpose(out, (1, 0, 2, 3))                        # (N, Cout, H2, W2)


# ------------------------------ reference -------------------------------------
def reference_forward(x_nchw, w1, b1, g1, be1, g2, be2, w2, b2, g3, be3):
    """Pure-JAX reference: literal conv+bias, two BNs, conv+bias, BN, ReLUs."""
    x_nhwc = jnp.transpose(x_nchw, (0, 2, 3, 1))

    def bn(y, g, b):
        m = jnp.mean(y, axis=(0, 1, 2), keepdims=True)
        v = jnp.var(y, axis=(0, 1, 2), keepdims=True)
        return (y - m) / jnp.sqrt(v + EPS) * g.reshape(1, 1, 1, -1) + b.reshape(1, 1, 1, -1)

    dn1 = jax.lax.conv_dimension_numbers(x_nhwc.shape, w1.shape, ('NHWC', 'HWIO', 'NHWC'))
    y = jax.lax.conv_general_dilated(x_nhwc, w1, (1, 1), 'VALID',
                                     dimension_numbers=dn1) + b1.reshape(1, 1, 1, -1)
    y = bn(y, g1, be1)
    y = bn(y, g2, be2)
    y = jnp.maximum(y, 0.0)
    dn2 = jax.lax.conv_dimension_numbers(y.shape, w2.shape, ('NHWC', 'HWIO', 'NHWC'))
    y = jax.lax.conv_general_dilated(y, w2, (1, 1), 'VALID',
                                     dimension_numbers=dn2) + b2.reshape(1, 1, 1, -1)
    y = bn(y, g3, be3)
    return jnp.transpose(jnp.maximum(y, 0.0), (0, 3, 1, 2))        # NCHW


if __name__ == "__main__":
    key = jax.random.PRNGKey(0)
    keys = jax.random.split(key, 11)

    x_nchw = jax.random.normal(keys[0], (N_IMG, C_IN, H, W), dtype=jnp.float32)

    # Deterministic synthetic parameters (HWIO conv weights, (1, C) per-channel vecs).
    w1 = 0.1 * jax.random.normal(keys[1], (3, 3, C_IN, C_MID), dtype=jnp.float32)
    b1 = 0.1 * jax.random.normal(keys[2], (1, C_MID), dtype=jnp.float32)
    g1 = 1.0 + 0.1 * jax.random.normal(keys[3], (1, C_MID), dtype=jnp.float32)
    be1 = 0.1 * jax.random.normal(keys[4], (1, C_MID), dtype=jnp.float32)
    g2 = 1.0 + 0.1 * jax.random.normal(keys[5], (1, C_MID), dtype=jnp.float32)
    be2 = 0.1 * jax.random.normal(keys[6], (1, C_MID), dtype=jnp.float32)
    w2 = 0.1 * jax.random.normal(keys[7], (3, 3, C_MID, C_OUT), dtype=jnp.float32)
    b2 = 0.1 * jax.random.normal(keys[8], (1, C_OUT), dtype=jnp.float32)
    g3 = 1.0 + 0.1 * jax.random.normal(keys[9], (1, C_OUT), dtype=jnp.float32)
    be3 = 0.1 * jax.random.normal(keys[10], (1, C_OUT), dtype=jnp.float32)

    params = (w1, b1, g1, be1, g2, be2, w2, b2, g3, be3)

    out = convblock_forward(x_nchw, params)
    out = jax.block_until_ready(out)

    ref = reference_forward(x_nchw, w1, b1, g1, be1, g2, be2, w2, b2, g3, be3)
    ref = jax.block_until_ready(ref)

    assert out.shape == (N_IMG, C_OUT, H2, W2), out.shape
    np.testing.assert_allclose(np.asarray(out), np.asarray(ref), rtol=1e-3, atol=1e-3)

    print("KERNEL_OK")
</pallas_src>

<mosaic_0001>
module attributes {stable_mosaic.version = 11 : i64} {
  func.func @convblock_kernel(%arg0: memref<8x1280xf32, #tpu.memory_space<vmem>>, %arg1: memref<16x72xf32, #tpu.memory_space<vmem>>, %arg2: memref<8x8xf32, #tpu.memory_space<vmem>>, %arg3: memref<8x1024xf32, #tpu.memory_space<vmem>>) attributes {dimension_semantics = [], scalar_prefetch = 0 : i64, scratch_operands = 0 : i64, tpu.core_type = #tpu.core_type<tc>} {
    %c0 = arith.constant 0 : index
    %c0_0 = arith.constant 0 : index
    %0 = vector.load %arg0[%c0, %c0_0] : memref<8x1280xf32, #tpu.memory_space<vmem>>, vector<8x1280xf32>
    %c0_1 = arith.constant 0 : index
    %c0_2 = arith.constant 0 : index
    %1 = vector.load %arg1[%c0_1, %c0_2] : memref<16x72xf32, #tpu.memory_space<vmem>>, vector<8x72xf32>
    %c8 = arith.constant 8 : index
    %c0_3 = arith.constant 0 : index
    %2 = vector.load %arg1[%c8, %c0_3] : memref<16x72xf32, #tpu.memory_space<vmem>>, vector<8x72xf32>
    %c0_4 = arith.constant 0 : index
    %c0_5 = arith.constant 0 : index
    %3 = vector.load %arg2[%c0_4, %c0_5] : memref<8x8xf32, #tpu.memory_space<vmem>>, vector<8x1xf32>
    %c0_6 = arith.constant 0 : index
    %c1 = arith.constant 1 : index
    %4 = vector.load %arg2[%c0_6, %c1] : memref<8x8xf32, #tpu.memory_space<vmem>>, vector<8x1xf32>
    %c0_7 = arith.constant 0 : index
    %c2 = arith.constant 2 : index
    %5 = vector.load %arg2[%c0_7, %c2] : memref<8x8xf32, #tpu.memory_space<vmem>>, vector<8x1xf32>
    %c0_8 = arith.constant 0 : index
    %c3 = arith.constant 3 : index
    %6 = vector.load %arg2[%c0_8, %c3] : memref<8x8xf32, #tpu.memory_space<vmem>>, vector<8x1xf32>
    %c0_9 = arith.constant 0 : index
    %c4 = arith.constant 4 : index
    %7 = vector.load %arg2[%c0_9, %c4] : memref<8x8xf32, #tpu.memory_space<vmem>>, vector<8x1xf32>
    %8 = vector.extract_strided_slice %0 {offsets = [0, 0], sizes = [8, 1152], strides = [1, 1]} : vector<8x1280xf32> to vector<8x1152xf32>
    %9 = vector.extract_strided_slice %0 {offsets = [0, 1], sizes = [8, 1152], strides = [1, 1]} : vector<8x1280xf32> to vector<8x1152xf32>
    %10 = vector.extract_strided_slice %0 {offsets = [0, 2], sizes = [8, 1152], strides = [1, 1]} : vector<8x1280xf32> to vector<8x1152xf32>
    %11 = vector.extract_strided_slice %0 {offsets = [0, 16], sizes = [8, 1152], strides = [1, 1]} : vector<8x1280xf32> to vector<8x1152xf32>
    %12 = vector.extract_strided_slice %0 {offsets = [0, 17], sizes = [8, 1152], strides = [1, 1]} : vector<8x1280xf32> to vector<8x1152xf32>
    %13 = vector.extract_strided_slice %0 {offsets = [0, 18], sizes = [8, 1152], strides = [1, 1]} : vector<8x1280xf32> to vector<8x1152xf32>
    %14 = vector.extract_strided_slice %0 {offsets = [0, 32], sizes = [8, 1152], strides = [1, 1]} : vector<8x1280xf32> to vector<8x1152xf32>
    %15 = vector.extract_strided_slice %0 {offsets = [0, 33], sizes = [8, 1152], strides = [1, 1]} : vector<8x1280xf32> to vector<8x1152xf32>
    %16 = vector.extract_strided_slice %0 {offsets = [0, 34], sizes = [8, 1152], strides = [1, 1]} : vector<8x1280xf32> to vector<8x1152xf32>
    %17 = tpu.concatenate %8, %9, %10, %11, %12, %13, %14, %15, %16 in 0 : vector<8x1152xf32>, vector<8x1152xf32>, vector<8x1152xf32>, vector<8x1152xf32>, vector<8x1152xf32>, vector<8x1152xf32>, vector<8x1152xf32>, vector<8x1152xf32>, vector<8x1152xf32> -> vector<72x1152xf32>
    %cst = arith.constant dense<0.000000e+00> : vector<8x1152xf32>
    %18 = tpu.matmul %1, %17, %cst {dimension_numbers = #tpu.dot_dimension_numbers<[1], [0], [0], [1], [0, 0, 1, 1], [], []>} : vector<8x72xf32>, vector<72x1152xf32>, vector<8x1152xf32> -> vector<8x1152xf32>
    %19 = tpu.iota {dimensions = array<i32: 1>} : vector<1x1152xi32>
    %c511_i32 = arith.constant 511 : i32
    %20 = vector.broadcast %c511_i32 : i32 to vector<1x1152xi32>
    %21 = arith.andi %19, %20 : vector<1x1152xi32>
    %c4_i32 = arith.constant 4 : i32
    %22 = vector.broadcast %c4_i32 : i32 to vector<1x1152xi32>
    %23 = arith.shrsi %21, %22 : vector<1x1152xi32>
    %c14_i32 = arith.constant 14 : i32
    %24 = vector.broadcast %c14_i32 : i32 to vector<1x1152xi32>
    %25 = arith.cmpi slt, %23, %24 : vector<1x1152xi32>
    %c15_i32 = arith.constant 15 : i32
    %26 = vector.broadcast %c15_i32 : i32 to vector<1x1152xi32>
    %27 = arith.andi %21, %26 : vector<1x1152xi32>
    %c14_i32_10 = arith.constant 14 : i32
    %28 = vector.broadcast %c14_i32_10 : i32 to vector<1x1152xi32>
    %29 = arith.cmpi slt, %27, %28 : vector<1x1152xi32>
    %30 = arith.andi %25, %29 : vector<1x1152xi1>
    %c1024_i32 = arith.constant 1024 : i32
    %31 = vector.broadcast %c1024_i32 : i32 to vector<1x1152xi32>
    %32 = arith.cmpi slt, %19, %31 : vector<1x1152xi32>
    %33 = arith.andi %30, %32 : vector<1x1152xi1>
    %34 = arith.extui %33 : vector<1x1152xi1> to vector<1x1152xi32>
    %35 = arith.sitofp %34 : vector<1x1152xi32> to vector<1x1152xf32>
    %36 = vector.broadcast %35 : vector<1x1152xf32> to vector<8x1152xf32>
    %37 = arith.mulf %18, %36 : vector<8x1152xf32>
    %38 = arith.mulf %37, %37 : vector<8x1152xf32>
    %39 = tpu.concatenate %37, %38 in 0 : vector<8x1152xf32>, vector<8x1152xf32> -> vector<16x1152xf32>
    %cst_11 = arith.constant dense<0.000000e+00> : vector<16xf32>
    %40 = vector.multi_reduction <add>, %39, %cst_11 [1] : vector<16x1152xf32> to vector<16xf32>
    %41 = vector.shape_cast %40 : vector<16xf32> to vector<16x1xf32>
    %42 = vector.extract_strided_slice %41 {offsets = [0, 0], sizes = [8, 1], strides = [1, 1]} : vector<16x1xf32> to vector<8x1xf32>
    %cst_12 = arith.constant 0.00255102036 : f32
    %43 = vector.broadcast %cst_12 : f32 to vector<8x1xf32>
    %44 = arith.mulf %42, %43 : vector<8x1xf32>
    %45 = vector.extract_strided_slice %41 {offsets = [8, 0], sizes = [8, 1], strides = [1, 1]} : vector<16x1xf32> to vector<8x1xf32>
    %cst_13 = arith.constant 0.00255102036 : f32
    %46 = vector.broadcast %cst_13 : f32 to vector<8x1xf32>
    %47 = arith.mulf %45, %46 : vector<8x1xf32>
    %48 = arith.mulf %44, %44 : vector<8x1xf32>
    %49 = arith.subf %47, %48 : vector<8x1xf32>
    %cst_14 = arith.constant 9.99999974E-6 : f32
    %50 = vector.broadcast %cst_14 : f32 to vector<8x1xf32>
    %51 = arith.addf %49, %50 : vector<8x1xf32>
    %52 = math.rsqrt %51 : vector<8x1xf32>
    %53 = arith.mulf %3, %52 : vector<8x1xf32>
    %54 = arith.mulf %53, %4 : vector<8x1xf32>
    %55 = arith.mulf %53, %53 : vector<8x1xf32>
    %56 = arith.mulf %55, %49 : vector<8x1xf32>
    %cst_15 = arith.constant 9.99999974E-6 : f32
    %57 = vector.broadcast %cst_15 : f32 to vector<8x1xf32>
    %58 = arith.addf %56, %57 : vector<8x1xf32>
    %59 = math.rsqrt %58 : vector<8x1xf32>
    %60 = arith.mulf %54, %59 : vector<8x1xf32>
    %61 = vector.broadcast %44 : vector<8x1xf32> to vector<8x1152xf32>
    %62 = arith.subf %18, %61 : vector<8x1152xf32>
    %63 = vector.broadcast %60 : vector<8x1xf32> to vector<8x1152xf32>
    %64 = arith.mulf %62, %63 : vector<8x1152xf32>
    %65 = vector.broadcast %5 : vector<8x1xf32> to vector<8x1152xf32>
    %66 = arith.addf %64, %65 : vector<8x1152xf32>
    %cst_16 = arith.constant 0.000000e+00 : f32
    %67 = vector.broadcast %cst_16 : f32 to vector<8x1152xf32>
    %68 = arith.maximumf %66, %67 : vector<8x1152xf32>
    %69 = vector.extract_strided_slice %68 {offsets = [0, 0], sizes = [8, 1024], strides = [1, 1]} : vector<8x1152xf32> to vector<8x1024xf32>
    %70 = vector.extract_strided_slice %68 {offsets = [0, 1], sizes = [8, 1024], strides = [1, 1]} : vector<8x1152xf32> to vector<8x1024xf32>
    %71 = vector.extract_strided_slice %68 {offsets = [0, 2], sizes = [8, 1024], strides = [1, 1]} : vector<8x1152xf32> to vector<8x1024xf32>
    %72 = vector.extract_strided_slice %68 {offsets = [0, 16], sizes = [8, 1024], strides = [1, 1]} : vector<8x1152xf32> to vector<8x1024xf32>
    %73 = vector.extract_strided_slice %68 {offsets = [0, 17], sizes = [8, 1024], strides = [1, 1]} : vector<8x1152xf32> to vector<8x1024xf32>
    %74 = vector.extract_strided_slice %68 {offsets = [0, 18], sizes = [8, 1024], strides = [1, 1]} : vector<8x1152xf32> to vector<8x1024xf32>
    %75 = vector.extract_strided_slice %68 {offsets = [0, 32], sizes = [8, 1024], strides = [1, 1]} : vector<8x1152xf32> to vector<8x1024xf32>
    %76 = vector.extract_strided_slice %68 {offsets = [0, 33], sizes = [8, 1024], strides = [1, 1]} : vector<8x1152xf32> to vector<8x1024xf32>
    %77 = vector.extract_strided_slice %68 {offsets = [0, 34], sizes = [8, 1024], strides = [1, 1]} : vector<8x1152xf32> to vector<8x1024xf32>
    %78 = tpu.concatenate %69, %70, %71, %72, %73, %74, %75, %76, %77 in 0 : vector<8x1024xf32>, vector<8x1024xf32>, vector<8x1024xf32>, vector<8x1024xf32>, vector<8x1024xf32>, vector<8x1024xf32>, vector<8x1024xf32>, vector<8x1024xf32>, vector<8x1024xf32> -> vector<72x1024xf32>
    %cst_17 = arith.constant dense<0.000000e+00> : vector<8x1024xf32>
    %79 = tpu.matmul %2, %78, %cst_17 {dimension_numbers = #tpu.dot_dimension_numbers<[1], [0], [0], [1], [0, 0, 1, 1], [], []>} : vector<8x72xf32>, vector<72x1024xf32>, vector<8x1024xf32> -> vector<8x1024xf32>
    %80 = tpu.iota {dimensions = array<i32: 1>} : vector<1x1024xi32>
    %c511_i32_18 = arith.constant 511 : i32
    %81 = vector.broadcast %c511_i32_18 : i32 to vector<1x1024xi32>
    %82 = arith.andi %80, %81 : vector<1x1024xi32>
    %c4_i32_19 = arith.constant 4 : i32
    %83 = vector.broadcast %c4_i32_19 : i32 to vector<1x1024xi32>
    %84 = arith.shrsi %82, %83 : vector<1x1024xi32>
    %c12_i32 = arith.constant 12 : i32
    %85 = vector.broadcast %c12_i32 : i32 to vector<1x1024xi32>
    %86 = arith.cmpi slt, %84, %85 : vector<1x1024xi32>
    %c15_i32_20 = arith.constant 15 : i32
    %87 = vector.broadcast %c15_i32_20 : i32 to vector<1x1024xi32>
    %88 = arith.andi %82, %87 : vector<1x1024xi32>
    %c12_i32_21 = arith.constant 12 : i32
    %89 = vector.broadcast %c12_i32_21 : i32 to vector<1x1024xi32>
    %90 = arith.cmpi slt, %88, %89 : vector<1x1024xi32>
    %91 = arith.andi %86, %90 : vector<1x1024xi1>
    %c1024_i32_22 = arith.constant 1024 : i32
    %92 = vector.broadcast %c1024_i32_22 : i32 to vector<1x1024xi32>
    %93 = arith.cmpi slt, %80, %92 : vector<1x1024xi32>
    %94 = arith.andi %91, %93 : vector<1x1024xi1>
    %95 = arith.extui %94 : vector<1x1024xi1> to vector<1x1024xi32>
    %96 = arith.sitofp %95 : vector<1x1024xi32> to vector<1x1024xf32>
    %97 = vector.broadcast %96 : vector<1x1024xf32> to vector<8x1024xf32>
    %98 = arith.mulf %79, %97 : vector<8x1024xf32>
    %99 = arith.mulf %98, %98 : vector<8x1024xf32>
    %100 = tpu.concatenate %98, %99 in 0 : vector<8x1024xf32>, vector<8x1024xf32> -> vector<16x1024xf32>
    %cst_23 = arith.constant dense<0.000000e+00> : vector<16xf32>
    %101 = vector.multi_reduction <add>, %100, %cst_23 [1] : vector<16x1024xf32> to vector<16xf32>
    %102 = vector.shape_cast %101 : vector<16xf32> to vector<16x1xf32>
    %103 = vector.extract_strided_slice %102 {offsets = [0, 0], sizes = [8, 1], strides = [1, 1]} : vector<16x1xf32> to vector<8x1xf32>
    %cst_24 = arith.constant 0.00347222225 : f32
    %104 = vector.broadcast %cst_24 : f32 to vector<8x1xf32>
    %105 = arith.mulf %103, %104 : vector<8x1xf32>
    %106 = vector.extract_strided_slice %102 {offsets = [8, 0], sizes = [8, 1], strides = [1, 1]} : vector<16x1xf32> to vector<8x1xf32>
    %cst_25 = arith.constant 0.00347222225 : f32
    %107 = vector.broadcast %cst_25 : f32 to vector<8x1xf32>
    %108 = arith.mulf %106, %107 : vector<8x1xf32>
    %109 = arith.mulf %105, %105 : vector<8x1xf32>
    %110 = arith.subf %108, %109 : vector<8x1xf32>
    %111 = vector.broadcast %105 : vector<8x1xf32> to vector<8x1024xf32>
    %112 = arith.subf %79, %111 : vector<8x1024xf32>
    %cst_26 = arith.constant 9.99999974E-6 : f32
    %113 = vector.broadcast %cst_26 : f32 to vector<8x1xf32>
    %114 = arith.addf %110, %113 : vector<8x1xf32>
    %115 = math.rsqrt %114 : vector<8x1xf32>
    %116 = arith.mulf %6, %115 : vector<8x1xf32>
    %117 = vector.broadcast %116 : vector<8x1xf32> to vector<8x1024xf32>
    %118 = arith.mulf %112, %117 : vector<8x1024xf32>
    %119 = vector.broadcast %7 : vector<8x1xf32> to vector<8x1024xf32>
    %120 = arith.addf %118, %119 : vector<8x1024xf32>
    %cst_27 = arith.constant 0.000000e+00 : f32
    %121 = vector.broadcast %cst_27 : f32 to vector<8x1024xf32>
    %122 = arith.maximumf %120, %121 : vector<8x1024xf32>
    %c0_28 = arith.constant 0 : index
    %c0_29 = arith.constant 0 : index
    %123 = vector.load %arg3[%c0_28, %c0_29] : memref<8x1024xf32, #tpu.memory_space<vmem>>, vector<8x1024xf32>
    tpu.vector_store %arg3[%c0_28, %c0_29], %122 {strides = array<i32>} : memref<8x1024xf32, #tpu.memory_space<vmem>>, vector<8x1024xf32>,
    return
  }
}

</mosaic_0001>

<llo_original>
// kernel: convblock_forward.1
$region0: #{convblock_forward.1}
  #allocation0 [shape = 'u32[]', space=smem, size = 0x4, offset = 0x4, fixed_abs, tag = 'smem constant byte address 0x4 - core index']
  #allocation1 [shape = 'u32[144,128]{1,0:T(1,128)}', space=vmem, size = 0x12000, scoped, tag = 'internal scratch']
  %s0 = inlined_call_operand.vmem [shape: f32[8,1280], index: 0, kind: input, shape index: {}]
  %s1 = inlined_call_operand.vmem [shape: f32[16,72], index: 1, kind: input, shape index: {}]
  %s2 = inlined_call_operand.vmem [shape: f32[8,8], index: 2, kind: input, shape index: {}]
  %s3 = inlined_call_operand.vmem [shape: f32[8,1024], index: 3, kind: output, shape index: {}]
  %s4 = sld [smem:[#allocation0]]
  $region22: #{convblock_forward.1} parent=0
    _
  %s6 = ssub.s32 1, %s4
  %s7 = scalar_select 0, %s6, %s4
  // Predicated region
  $region2: #{convblock_forward.1} parent=0 // pred_check
    _
  $region3: #{convblock_forward.1} parent=0 // pred_check_branch
    %9 = sbr.rel (0) target = $region5
  $region4: #{convblock_forward.1} parent=0 // pred_region
    _
  $region5: #{convblock_forward.1} parent=0 // pred_fallthru
    _
  // Predicated region
  $region6: #{convblock_forward.1} parent=0 // pred_check
    _
  $region7: #{convblock_forward.1} parent=0 // pred_check_branch
    %11 = sbr.rel (0) target = $region9
  $region8: #{convblock_forward.1} parent=0 // pred_region
    _
  $region9: #{convblock_forward.1} parent=0 // pred_fallthru
    _
  // Predicated region
  $region10: #{convblock_forward.1} parent=0 // pred_check
    _
  $region11: #{convblock_forward.1} parent=0 // pred_check_branch
    %13 = sbr.rel (0) target = $region13
  $region12: #{convblock_forward.1} parent=0 // pred_region
    _
  $region13: #{convblock_forward.1} parent=0 // pred_fallthru
    _
  %v14 = vld [vmem:[%s0] sm:$0xff]
  %v15 = vld [vmem:[%s0 + $0x8] sm:$0xff]
  %v16 = vld [vmem:[%s0 + $0x10] sm:$0xff]
  %v17 = vld [vmem:[%s0 + $0x18] sm:$0xff]
  %v18 = vld [vmem:[%s0 + $0x20] sm:$0xff]
  %v19 = vld [vmem:[%s0 + $0x28] sm:$0xff]
  %v20 = vld [vmem:[%s0 + $0x30] sm:$0xff]
  %v21 = vld [vmem:[%s0 + $0x38] sm:$0xff]
  %v22 = vld [vmem:[%s0 + $0x40] sm:$0xff]
  %v23 = vld [vmem:[%s0 + $0x48] sm:$0xff]
  %v24 = vld [vmem:[%s1] sm:$0xff]
  %v25 = vld [vmem:[%s1 + $0x8] sm:$0xff]
  %v26 = vld [vmem:[%s2] sm:$0xff]
  %37 = vrot.lane.b32.xlu0 %v14, 127
  %v38 = vpop.permute.xlu0 %37
  %39 = vrot.lane.b32.xlu0 %v15, 127
  %v40 = vpop.permute.xlu0 %39
  %41 = vrot.lane.b32.xlu0 %v16, 127
  %v42 = vpop.permute.xlu0 %41
  %43 = vrot.lane.b32.xlu0 %v17, 127
  %v44 = vpop.permute.xlu0 %43
  %45 = vrot.lane.b32.xlu0 %v18, 127
  %v46 = vpop.permute.xlu0 %45
  %47 = vrot.lane.b32.xlu0 %v19, 127
  %v48 = vpop.permute.xlu0 %47
  %49 = vrot.lane.b32.xlu0 %v20, 127
  %v50 = vpop.permute.xlu0 %49
  %51 = vrot.lane.b32.xlu0 %v21, 127
  %v52 = vpop.permute.xlu0 %51
  %53 = vrot.lane.b32.xlu0 %v22, 127
  %v54 = vpop.permute.xlu0 %53
  %55 = vrot.lane.b32.xlu0 %v23, 127
  %v56 = vpop.permute.xlu0 %55
  %vm57 = vcmask 1039360
  %v58 = vsel %vm57, %v38, %v40
  %v59 = vsel %vm57, %v40, %v42
  %v60 = vsel %vm57, %v42, %v44
  %v61 = vsel %vm57, %v44, %v46
  %v62 = vsel %vm57, %v46, %v48
  %v63 = vsel %vm57, %v48, %v50
  %v64 = vsel %vm57, %v50, %v52
  %v65 = vsel %vm57, %v52, %v54
  %v66 = vsel %vm57, %v54, %v56
  %76 = vrot.lane.b32.xlu0 %v14, 126
  %v77 = vpop.permute.xlu0 %76
  %78 = vrot.lane.b32.xlu0 %v15, 126
  %v79 = vpop.permute.xlu0 %78
  %80 = vrot.lane.b32.xlu0 %v16, 126
  %v81 = vpop.permute.xlu0 %80
  %82 = vrot.lane.b32.xlu0 %v17, 126
  %v83 = vpop.permute.xlu0 %82
  %84 = vrot.lane.b32.xlu0 %v18, 126
  %v85 = vpop.permute.xlu0 %84
  %86 = vrot.lane.b32.xlu0 %v19, 126
  %v87 = vpop.permute.xlu0 %86
  %88 = vrot.lane.b32.xlu0 %v20, 126
  %v89 = vpop.permute.xlu0 %88
  %90 = vrot.lane.b32.xlu0 %v21, 126
  %v91 = vpop.permute.xlu0 %90
  %92 = vrot.lane.b32.xlu0 %v22, 126
  %v93 = vpop.permute.xlu0 %92
  %94 = vrot.lane.b32.xlu0 %v23, 126
  %v95 = vpop.permute.xlu0 %94
  %vm96 = vcmask 1031168
  %v97 = vsel %vm96, %v77, %v79
  %v98 = vsel %vm96, %v79, %v81
  %v99 = vsel %vm96, %v81, %v83
  %v100 = vsel %vm96, %v83, %v85
  %v101 = vsel %vm96, %v85, %v87
  %v102 = vsel %vm96, %v87, %v89
  %v103 = vsel %vm96, %v89, %v91
  %v104 = vsel %vm96, %v91, %v93
  %v105 = vsel %vm96, %v93, %v95
  %115 = vrot.lane.b32.xlu0 %v14, 112
  %v116 = vpop.permute.xlu0 %115
  %117 = vrot.lane.b32.xlu0 %v15, 112
  %v118 = vpop.permute.xlu0 %117
  %119 = vrot.lane.b32.xlu0 %v16, 112
  %v120 = vpop.permute.xlu0 %119
  %121 = vrot.lane.b32.xlu0 %v17, 112
  %v122 = vpop.permute.xlu0 %121
  %123 = vrot.lane.b32.xlu0 %v18, 112
  %v124 = vpop.permute.xlu0 %123
  %125 = vrot.lane.b32.xlu0 %v19, 112
  %v126 = vpop.permute.xlu0 %125
  %127 = vrot.lane.b32.xlu0 %v20, 112
  %v128 = vpop.permute.xlu0 %127
  %129 = vrot.lane.b32.xlu0 %v21, 112
  %v130 = vpop.permute.xlu0 %129
  %131 = vrot.lane.b32.xlu0 %v22, 112
  %v132 = vpop.permute.xlu0 %131
  %133 = vrot.lane.b32.xlu0 %v23, 112
  %v134 = vpop.permute.xlu0 %133
  %vm135 = vcmask 916480
  %v136 = vsel %vm135, %v116, %v118
  %v137 = vsel %vm135, %v118, %v120
  %v138 = vsel %vm135, %v120, %v122
  %v139 = vsel %vm135, %v122, %v124
  %v140 = vsel %vm135, %v124, %v126
  %v141 = vsel %vm135, %v126, %v128
  %v142 = vsel %vm135, %v128, %v130
  %v143 = vsel %vm135, %v130, %v132
  %v144 = vsel %vm135, %v132, %v134
  %154 = vrot.lane.b32.xlu0 %v14, 111
  %v155 = vpop.permute.xlu0 %154
  %156 = vrot.lane.b32.xlu0 %v15, 111
  %v157 = vpop.permute.xlu0 %156
  %158 = vrot.lane.b32.xlu0 %v16, 111
  %v159 = vpop.permute.xlu0 %158
  %160 = vrot.lane.b32.xlu0 %v17, 111
  %v161 = vpop.permute.xlu0 %160
  %162 = vrot.lane.b32.xlu0 %v18, 111
  %v163 = vpop.permute.xlu0 %162
  %164 = vrot.lane.b32.xlu0 %v19, 111
  %v165 = vpop.permute.xlu0 %164
  %166 = vrot.lane.b32.xlu0 %v20, 111
  %v167 = vpop.permute.xlu0 %166
  %168 = vrot.lane.b32.xlu0 %v21, 111
  %v169 = vpop.permute.xlu0 %168
  %170 = vrot.lane.b32.xlu0 %v22, 111
  %v171 = vpop.permute.xlu0 %170
  %172 = vrot.lane.b32.xlu0 %v23, 111
  %v173 = vpop.permute.xlu0 %172
  %vm174 = vcmask 908288
  %v175 = vsel %vm174, %v155, %v157
  %v176 = vsel %vm174, %v157, %v159
  %v177 = vsel %vm174, %v159, %v161
  %v178 = vsel %vm174, %v161, %v163
  %v179 = vsel %vm174, %v163, %v165
  %v180 = vsel %vm174, %v165, %v167
  %v181 = vsel %vm174, %v167, %v169
  %v182 = vsel %vm174, %v169, %v171
  %v183 = vsel %vm174, %v171, %v173
  %193 = vrot.lane.b32.xlu0 %v14, 110
  %v194 = vpop.permute.xlu0 %193
  %195 = vrot.lane.b32.xlu0 %v15, 110
  %v196 = vpop.permute.xlu0 %195
  %197 = vrot.lane.b32.xlu0 %v16, 110
  %v198 = vpop.permute.xlu0 %197
  %199 = vrot.lane.b32.xlu0 %v17, 110
  %v200 = vpop.permute.xlu0 %199
  %201 = vrot.lane.b32.xlu0 %v18, 110
  %v202 = vpop.permute.xlu0 %201
  %203 = vrot.lane.b32.xlu0 %v19, 110
  %v204 = vpop.permute.xlu0 %203
  %205 = vrot.lane.b32.xlu0 %v20, 110
  %v206 = vpop.permute.xlu0 %205
  %207 = vrot.lane.b32.xlu0 %v21, 110
  %v208 = vpop.permute.xlu0 %207
  %209 = vrot.lane.b32.xlu0 %v22, 110
  %v210 = vpop.permute.xlu0 %209
  %211 = vrot.lane.b32.xlu0 %v23, 110
  %v212 = vpop.permute.xlu0 %211
  %vm213 = vcmask 900096
  %v214 = vsel %vm213, %v194, %v196
  %v215 = vsel %vm213, %v196, %v198
  %v216 = vsel %vm213, %v198, %v200
  %v217 = vsel %vm213, %v200, %v202
  %v218 = vsel %vm213, %v202, %v204
  %v219 = vsel %vm213, %v204, %v206
  %v220 = vsel %vm213, %v206, %v208
  %v221 = vsel %vm213, %v208, %v210
  %v222 = vsel %vm213, %v210, %v212
  %232 = vrot.lane.b32.xlu0 %v14, 96
  %v233 = vpop.permute.xlu0 %232
  %234 = vrot.lane.b32.xlu0 %v15, 96
  %v235 = vpop.permute.xlu0 %234
  %236 = vrot.lane.b32.xlu0 %v16, 96
  %v237 = vpop.permute.xlu0 %236
  %238 = vrot.lane.b32.xlu0 %v17, 96
  %v239 = vpop.permute.xlu0 %238
  %240 = vrot.lane.b32.xlu0 %v18, 96
  %v241 = vpop.permute.xlu0 %240
  %242 = vrot.lane.b32.xlu0 %v19, 96
  %v243 = vpop.permute.xlu0 %242
  %244 = vrot.lane.b32.xlu0 %v20, 96
  %v245 = vpop.permute.xlu0 %244
  %246 = vrot.lane.b32.xlu0 %v21, 96
  %v247 = vpop.permute.xlu0 %246
  %248 = vrot.lane.b32.xlu0 %v22, 96
  %v249 = vpop.permute.xlu0 %248
  %250 = vrot.lane.b32.xlu0 %v23, 96
  %v251 = vpop.permute.xlu0 %250
  %vm252 = vcmask 785408
  %v253 = vsel %vm252, %v233, %v235
  %v254 = vsel %vm252, %v235, %v237
  %v255 = vsel %vm252, %v237, %v239
  %v256 = vsel %vm252, %v239, %v241
  %v257 = vsel %vm252, %v241, %v243
  %v258 = vsel %vm252, %v243, %v245
  %v259 = vsel %vm252, %v245, %v247
  %v260 = vsel %vm252, %v247, %v249
  %v261 = vsel %vm252, %v249, %v251
  %271 = vrot.lane.b32.xlu0 %v14, 95
  %v272 = vpop.permute.xlu0 %271
  %273 = vrot.lane.b32.xlu0 %v15, 95
  %v274 = vpop.permute.xlu0 %273
  %275 = vrot.lane.b32.xlu0 %v16, 95
  %v276 = vpop.permute.xlu0 %275
  %277 = vrot.lane.b32.xlu0 %v17, 95
  %v278 = vpop.permute.xlu0 %277
  %279 = vrot.lane.b32.xlu0 %v18, 95
  %v280 = vpop.permute.xlu0 %279
  %281 = vrot.lane.b32.xlu0 %v19, 95
  %v282 = vpop.permute.xlu0 %281
  %283 = vrot.lane.b32.xlu0 %v20, 95
  %v284 = vpop.permute.xlu0 %283
  %285 = vrot.lane.b32.xlu0 %v21, 95
  %v286 = vpop.permute.xlu0 %285
  %287 = vrot.lane.b32.xlu0 %v22, 95
  %v288 = vpop.permute.xlu0 %287
  %289 = vrot.lane.b32.xlu0 %v23, 95
  %v290 = vpop.permute.xlu0 %289
  %vm291 = vcmask 777216
  %v292 = vsel %vm291, %v272, %v274
  %v293 = vsel %vm291, %v274, %v276
  %v294 = vsel %vm291, %v276, %v278
  %v295 = vsel %vm291, %v278, %v280
  %v296 = vsel %vm291, %v280, %v282
  %v297 = vsel %vm291, %v282, %v284
  %v298 = vsel %vm291, %v284, %v286
  %v299 = vsel %vm291, %v286, %v288
  %v300 = vsel %vm291, %v288, %v290
  %310 = vrot.lane.b32.xlu0 %v14, 94
  %v311 = vpop.permute.xlu0 %310
  %312 = vrot.lane.b32.xlu0 %v15, 94
  %v313 = vpop.permute.xlu0 %312
  %314 = vrot.lane.b32.xlu0 %v16, 94
  %v315 = vpop.permute.xlu0 %314
  %316 = vrot.lane.b32.xlu0 %v17, 94
  %v317 = vpop.permute.xlu0 %316
  %318 = vrot.lane.b32.xlu0 %v18, 94
  %v319 = vpop.permute.xlu0 %318
  %320 = vrot.lane.b32.xlu0 %v19, 94
  %v321 = vpop.permute.xlu0 %320
  %322 = vrot.lane.b32.xlu0 %v20, 94
  %v323 = vpop.permute.xlu0 %322
  %324 = vrot.lane.b32.xlu0 %v21, 94
  %v325 = vpop.permute.xlu0 %324
  %326 = vrot.lane.b32.xlu0 %v22, 94
  %v327 = vpop.permute.xlu0 %326
  %328 = vrot.lane.b32.xlu0 %v23, 94
  %v329 = vpop.permute.xlu0 %328
  %vm330 = vcmask 769024
  %v331 = vsel %vm330, %v311, %v313
  %v332 = vsel %vm330, %v313, %v315
  %v333 = vsel %vm330, %v315, %v317
  %v334 = vsel %vm330, %v317, %v319
  %v335 = vsel %vm330, %v319, %v321
  %v336 = vsel %vm330, %v321, %v323
  %v337 = vsel %vm330, %v323, %v325
  %v338 = vsel %vm330, %v325, %v327
  %v339 = vsel %vm330, %v327, %v329
  %vm349 = vcmask 588800
  %v351 = vsel %vm349, %v24, 0
  %353 = vmatprep.subr.mxu0 %v15
  %354 = vmatpush1.msra.mxu0 %v14
  %355 = vmatprep.subr.mxu0 %v59
  %356 = vmatpush1.msra.mxu0 %v58
  %357 = vmatprep.subr.mxu0 %v98
  %358 = vmatpush1.msra.mxu0 %v97
  %359 = vmatprep.subr.mxu0 %v137
  %360 = vmatpush1.msra.mxu0 %v136
  %361 = vmatprep.subr.mxu0 %v176
  %362 = vmatpush1.msra.mxu0 %v175
  %363 = vmatprep.subr.mxu0 %v215
  %364 = vmatpush1.msra.mxu0 %v214
  %365 = vmatprep.subr.mxu0 %v254
  %366 = vmatpush1.msra.mxu0 %v253
  %367 = vmatprep.subr.mxu0 %v293
  %368 = vmatpush1.msra.mxu0 %v292
  %369 = vmatprep.subr.mxu0 %v332
  %370 = vmatpush1.msra.mxu0 %v331
  %371 = vmatprep.subr.mxu0 0.0
  %372 = vmatpush1.msra.mxu0 0.0
  %373 = vmatprep.subr.mxu0 0.0
  %374 = vmatpush1.msra.mxu0 0.0
  %375 = vmatprep.subr.mxu0 0.0
  %376 = vmatpush1.msra.mxu0 0.0
  %377 = vmatprep.subr.mxu0 0.0
  %378 = vmatpush1.msra.mxu0 0.0
  %379 = vmatprep.subr.mxu0 0.0
  %380 = vmatpush1.msra.mxu0 0.0
  %381 = vmatprep.subr.mxu0 0.0
  %382 = vmatpush1.msra.mxu0 0.0
  %383 = vmatprep.subr.mxu0 0.0
  %384 = vmatpush1.msra.mxu0 0.0
  %385 = vmatprep.subr.mxu0 0.0
  %386 = vmatpush1.msra.mxu0 0.0
  %387 = vmatprep.subr.mxu0 0.0
  %388 = vmatpush1.msra.mxu0 0.0
  %389 = vmatprep.subr.mxu0 0.0
  %390 = vmatpush1.msra.mxu0 0.0
  %391 = vmatprep.subr.mxu0 0.0
  %392 = vmatpush1.msra.mxu0 0.0
  %393 = vmatprep.subr.mxu0 0.0
  %394 = vmatpush1.msra.mxu0 0.0
  %395 = vmatprep.subr.mxu0 0.0
  %396 = vmatpush1.msra.mxu0 0.0
  %397 = vmatprep.subr.mxu0 0.0
  %398 = vmatpush1.msra.mxu0 0.0
  %399 = vmatprep.subr.mxu0 0.0
  %400 = vmatpush1.msra.mxu0 0.0
  %401 = vmatprep.subr.mxu0 0.0
  %402 = vmatpush1.msra.mxu0 0.0
  %403 = vmatprep.subr.mxu0 0.0
  %404 = vmatpush1.msra.mxu0 0.0
  %405 = vmatprep.subr.mxu0 0.0
  %406 = vmatpush1.msra.mxu0 0.0
  %407 = vmatprep.subr.mxu0 0.0
  %408 = vmatpush1.msra.mxu0 0.0
  %409 = vmatprep.subr.mxu0 0.0
  %410 = vmatpush1.msra.mxu0 0.0
  %411 = vmatprep.subr.mxu0 0.0
  %412 = vmatpush1.msra.mxu0 0.0
  %413 = vmatprep.subr.mxu0 0.0
  %414 = vmatpush1.msra.mxu0 0.0
  %415 = vmatprep.subr.mxu0 0.0
  %416 = vmatpush1.msra.mxu0 0.0
  %417 = vmatprep.mubr.f32.mxu0 0.0
  %418 = vmatmul.mubr.f32.gmra.mrb[0].mxu0 %v351
  %v419 = vpop.f32.mrb[0].mxu0
  %v420 = vadd.f32 0.0, %v419
  %v421 = vpop.f32.mrb[0].mxu0
  %v422 = vadd.f32 0.0, %v421
  %423 = vdwg.mxu0
  %424 = vmatprep.subr.mxu0 %v17
  %425 = vmatpush1.msra.mxu0 %v16
  %426 = vmatprep.subr.mxu0 %v61
  %427 = vmatpush1.msra.mxu0 %v60
  %428 = vmatprep.subr.mxu0 %v100
  %429 = vmatpush1.msra.mxu0 %v99
  %430 = vmatprep.subr.mxu0 %v139
  %431 = vmatpush1.msra.mxu0 %v138
  %432 = vmatprep.subr.mxu0 %v178
  %433 = vmatpush1.msra.mxu0 %v177
  %434 = vmatprep.subr.mxu0 %v217
  %435 = vmatpush1.msra.mxu0 %v216
  %436 = vmatprep.subr.mxu0 %v256
  %437 = vmatpush1.msra.mxu0 %v255
  %438 = vmatprep.subr.mxu0 %v295
  %439 = vmatpush1.msra.mxu0 %v294
  %440 = vmatprep.subr.mxu0 %v334
  %441 = vmatpush1.msra.mxu0 %v333
  %442 = vmatprep.subr.mxu0 0.0
  %443 = vmatpush1.msra.mxu0 0.0
  %444 = vmatprep.subr.mxu0 0.0
  %445 = vmatpush1.msra.mxu0 0.0
  %446 = vmatprep.subr.mxu0 0.0
  %447 = vmatpush1.msra.mxu0 0.0
  %448 = vmatprep.subr.mxu0 0.0
  %449 = vmatpush1.msra.mxu0 0.0
  %450 = vmatprep.subr.mxu0 0.0
  %451 = vmatpush1.msra.mxu0 0.0
  %452 = vmatprep.subr.mxu0 0.0
  %453 = vmatpush1.msra.mxu0 0.0
  %454 = vmatprep.subr.mxu0 0.0
  %455 = vmatpush1.msra.mxu0 0.0
  %456 = vmatprep.subr.mxu0 0.0
  %457 = vmatpush1.msra.mxu0 0.0
  %458 = vmatprep.subr.mxu0 0.0
  %459 = vmatpush1.msra.mxu0 0.0
  %460 = vmatprep.subr.mxu0 0.0
  %461 = vmatpush1.msra.mxu0 0.0
  %462 = vmatprep.subr.mxu0 0.0
  %463 = vmatpush1.msra.mxu0 0.0
  %464 = vmatprep.subr.mxu0 0.0
  %465 = vmatpush1.msra.mxu0 0.0
  %466 = vmatprep.subr.mxu0 0.0
  %467 = vmatpush1.msra.mxu0 0.0
  %468 = vmatprep.subr.mxu0 0.0
  %469 = vmatpush1.msra.mxu0 0.0
  %470 = vmatprep.subr.mxu0 0.0
  %471 = vmatpush1.msra.mxu0 0.0
  %472 = vmatprep.subr.mxu0 0.0
  %473 = vmatpush1.msra.mxu0 0.0
  %474 = vmatprep.subr.mxu0 0.0
  %475 = vmatpush1.msra.mxu0 0.0
  %476 = vmatprep.subr.mxu0 0.0
  %477 = vmatpush1.msra.mxu0 0.0
  %478 = vmatprep.subr.mxu0 0.0
  %479 = vmatpush1.msra.mxu0 0.0
  %480 = vmatprep.subr.mxu0 0.0
  %481 = vmatpush1.msra.mxu0 0.0
  %482 = vmatprep.subr.mxu0 0.0
  %483 = vmatpush1.msra.mxu0 0.0
  %484 = vmatprep.subr.mxu0 0.0
  %485 = vmatpush1.msra.mxu0 0.0
  %486 = vmatprep.subr.mxu0 0.0
  %487 = vmatpush1.msra.mxu0 0.0
  %488 = vmatprep.mubr.f32.mxu0 0.0
  %489 = vmatmul.mubr.f32.gmra.mrb[0].mxu0 %v351
  %v490 = vpop.f32.mrb[0].mxu0
  %v491 = vadd.f32 0.0, %v490
  %v492 = vpop.f32.mrb[0].mxu0
  %v493 = vadd.f32 0.0, %v492
  %494 = vdwg.mxu0
  %495 = vmatprep.subr.mxu0 %v19
  %496 = vmatpush1.msra.mxu0 %v18
  %497 = vmatprep.subr.mxu0 %v63
  %498 = vmatpush1.msra.mxu0 %v62
  %499 = vmatprep.subr.mxu0 %v102
  %500 = vmatpush1.msra.mxu0 %v101
  %501 = vmatprep.subr.mxu0 %v141
  %502 = vmatpush1.msra.mxu0 %v140
  %503 = vmatprep.subr.mxu0 %v180
  %504 = vmatpush1.msra.mxu0 %v179
  %505 = vmatprep.subr.mxu0 %v219
  %506 = vmatpush1.msra.mxu0 %v218
  %507 = vmatprep.subr.mxu0 %v258
  %508 = vmatpush1.msra.mxu0 %v257
  %509 = vmatprep.subr.mxu0 %v297
  %510 = vmatpush1.msra.mxu0 %v296
  %511 = vmatprep.subr.mxu0 %v336
  %512 = vmatpush1.msra.mxu0 %v335
  %513 = vmatprep.subr.mxu0 0.0
  %514 = vmatpush1.msra.mxu0 0.0
  %515 = vmatprep.subr.mxu0 0.0
  %516 = vmatpush1.msra.mxu0 0.0
  %517 = vmatprep.subr.mxu0 0.0
  %518 = vmatpush1.msra.mxu0 0.0
  %519 = vmatprep.subr.mxu0 0.0
  %520 = vmatpush1.msra.mxu0 0.0
  %521 = vmatprep.subr.mxu0 0.0
  %522 = vmatpush1.msra.mxu0 0.0
  %523 = vmatprep.subr.mxu0 0.0
  %524 = vmatpush1.msra.mxu0 0.0
  %525 = vmatprep.subr.mxu0 0.0
  %526 = vmatpush1.msra.mxu0 0.0
  %527 = vmatprep.subr.mxu0 0.0
  %528 = vmatpush1.msra.mxu0 0.0
  %529 = vmatprep.subr.mxu0 0.0
  %530 = vmatpush1.msra.mxu0 0.0
  %531 = vmatprep.subr.mxu0 0.0
  %532 = vmatpush1.msra.mxu0 0.0
  %533 = vmatprep.subr.mxu0 0.0
  %534 = vmatpush1.msra.mxu0 0.0
  %535 = vmatprep.subr.mxu0 0.0
  %536 = vmatpush1.msra.mxu0 0.0
  %537 = vmatprep.subr.mxu0 0.0
  %538 = vmatpush1.msra.mxu0 0.0
  %539 = vmatprep.subr.mxu0 0.0
  %540 = vmatpush1.msra.mxu0 0.0
  %541 = vmatprep.subr.mxu0 0.0
  %542 = vmatpush1.msra.mxu0 0.0
  %543 = vmatprep.subr.mxu0 0.0
  %544 = vmatpush1.msra.mxu0 0.0
  %545 = vmatprep.subr.mxu0 0.0
  %546 = vmatpush1.msra.mxu0 0.0
  %547 = vmatprep.subr.mxu0 0.0
  %548 = vmatpush1.msra.mxu0 0.0
  %549 = vmatprep.subr.mxu0 0.0
  %550 = vmatpush1.msra.mxu0 0.0
  %551 = vmatprep.subr.mxu0 0.0
  %552 = vmatpush1.msra.mxu0 0.0
  %553 = vmatprep.subr.mxu0 0.0
  %554 = vmatpush1.msra.mxu0 0.0
  %555 = vmatprep.subr.mxu0 0.0
  %556 = vmatpush1.msra.mxu0 0.0
  %557 = vmatprep.subr.mxu0 0.0
  %558 = vmatpush1.msra.mxu0 0.0
  %559 = vmatprep.mubr.f32.mxu0 0.0
  %560 = vmatmul.mubr.f32.gmra.mrb[0].mxu0 %v351
  %v561 = vpop.f32.mrb[0].mxu0
  %v562 = vadd.f32 0.0, %v561
  %v563 = vpop.f32.mrb[0].mxu0
  %v564 = vadd.f32 0.0, %v563
  %565 = vdwg.mxu0
  %566 = vmatprep.subr.mxu0 %v21
  %567 = vmatpush1.msra.mxu0 %v20
  %568 = vmatprep.subr.mxu0 %v65
  %569 = vmatpush1.msra.mxu0 %v64
  %570 = vmatprep.subr.mxu0 %v104
  %571 = vmatpush1.msra.mxu0 %v103
  %572 = vmatprep.subr.mxu0 %v143
  %573 = vmatpush1.msra.mxu0 %v142
  %574 = vmatprep.subr.mxu0 %v182
  %575 = vmatpush1.msra.mxu0 %v181
  %576 = vmatprep.subr.mxu0 %v221
  %577 = vmatpush1.msra.mxu0 %v220
  %578 = vmatprep.subr.mxu0 %v260
  %579 = vmatpush1.msra.mxu0 %v259
  %580 = vmatprep.subr.mxu0 %v299
  %581 = vmatpush1.msra.mxu0 %v298
  %582 = vmatprep.subr.mxu0 %v338
  %583 = vmatpush1.msra.mxu0 %v337
  %584 = vmatprep.subr.mxu0 0.0
  %585 = vmatpush1.msra.mxu0 0.0
  %586 = vmatprep.subr.mxu0 0.0
  %587 = vmatpush1.msra.mxu0 0.0
  %588 = vmatprep.subr.mxu0 0.0
  %589 = vmatpush1.msra.mxu0 0.0
  %590 = vmatprep.subr.mxu0 0.0
  %591 = vmatpush1.msra.mxu0 0.0
  %592 = vmatprep.subr.mxu0 0.0
  %593 = vmatpush1.msra.mxu0 0.0
  %594 = vmatprep.subr.mxu0 0.0
  %595 = vmatpush1.msra.mxu0 0.0
  %596 = vmatprep.subr.mxu0 0.0
  %597 = vmatpush1.msra.mxu0 0.0
  %598 = vmatprep.subr.mxu0 0.0
  %599 = vmatpush1.msra.mxu0 0.0
  %600 = vmatprep.subr.mxu0 0.0
  %601 = vmatpush1.msra.mxu0 0.0
  %602 = vmatprep.subr.mxu0 0.0
  %603 = vmatpush1.msra.mxu0 0.0
  %604 = vmatprep.subr.mxu0 0.0
  %605 = vmatpush1.msra.mxu0 0.0
  %606 = vmatprep.subr.mxu0 0.0
  %607 = vmatpush1.msra.mxu0 0.0
  %608 = vmatprep.subr.mxu0 0.0
  %609 = vmatpush1.msra.mxu0 0.0
  %610 = vmatprep.subr.mxu0 0.0
  %611 = vmatpush1.msra.mxu0 0.0
  %612 = vmatprep.subr.mxu0 0.0
  %613 = vmatpush1.msra.mxu0 0.0
  %614 = vmatprep.subr.mxu0 0.0
  %615 = vmatpush1.msra.mxu0 0.0
  %616 = vmatprep.subr.mxu0 0.0
  %617 = vmatpush1.msra.mxu0 0.0
  %618 = vmatprep.subr.mxu0 0.0
  %619 = vmatpush1.msra.mxu0 0.0
  %620 = vmatprep.subr.mxu0 0.0
  %621 = vmatpush1.msra.mxu0 0.0
  %622 = vmatprep.subr.mxu0 0.0
  %623 = vmatpush1.msra.mxu0 0.0
  %624 = vmatprep.subr.mxu0 0.0
  %625 = vmatpush1.msra.mxu0 0.0
  %626 = vmatprep.subr.mxu0 0.0
  %627 = vmatpush1.msra.mxu0 0.0
  %628 = vmatprep.subr.mxu0 0.0
  %629 = vmatpush1.msra.mxu0 0.0
  %630 = vmatprep.mubr.f32.mxu0 0.0
  %631 = vmatmul.mubr.f32.gmra.mrb[0].mxu0 %v351
  %v632 = vpop.f32.mrb[0].mxu0
  %v633 = vadd.f32 0.0, %v632
  %v634 = vpop.f32.mrb[0].mxu0
  %v635 = vadd.f32 0.0, %v634
  %636 = vdwg.mxu0
  %637 = vmatprep.subr.mxu0 0.0
  %638 = vmatpush1.msra.mxu0 %v22
  %639 = vmatprep.subr.mxu0 0.0
  %640 = vmatpush1.msra.mxu0 %v66
  %641 = vmatprep.subr.mxu0 0.0
  %642 = vmatpush1.msra.mxu0 %v105
  %643 = vmatprep.subr.mxu0 0.0
  %644 = vmatpush1.msra.mxu0 %v144
  %645 = vmatprep.subr.mxu0 0.0
  %646 = vmatpush1.msra.mxu0 %v183
  %647 = vmatprep.subr.mxu0 0.0
  %648 = vmatpush1.msra.mxu0 %v222
  %649 = vmatprep.subr.mxu0 0.0
  %650 = vmatpush1.msra.mxu0 %v261
  %651 = vmatprep.subr.mxu0 0.0
  %652 = vmatpush1.msra.mxu0 %v300
  %653 = vmatprep.subr.mxu0 0.0
  %654 = vmatpush1.msra.mxu0 %v339
  %655 = vmatprep.subr.mxu0 0.0
  %656 = vmatpush1.msra.mxu0 0.0
  %657 = vmatprep.subr.mxu0 0.0
  %658 = vmatpush1.msra.mxu0 0.0
  %659 = vmatprep.subr.mxu0 0.0
  %660 = vmatpush1.msra.mxu0 0.0
  %661 = vmatprep.subr.mxu0 0.0
  %662 = vmatpush1.msra.mxu0 0.0
  %663 = vmatprep.subr.mxu0 0.0
  %664 = vmatpush1.msra.mxu0 0.0
  %665 = vmatprep.subr.mxu0 0.0
  %666 = vmatpush1.msra.mxu0 0.0
  %667 = vmatprep.subr.mxu0 0.0
  %668 = vmatpush1.msra.mxu0 0.0
  %669 = vmatprep.subr.mxu0 0.0
  %670 = vmatpush1.msra.mxu0 0.0
  %671 = vmatprep.subr.mxu0 0.0
  %672 = vmatpush1.msra.mxu0 0.0
  %673 = vmatprep.subr.mxu0 0.0
  %674 = vmatpush1.msra.mxu0 0.0
  %675 = vmatprep.subr.mxu0 0.0
  %676 = vmatpush1.msra.mxu0 0.0
  %677 = vmatprep.subr.mxu0 0.0
  %678 = vmatpush1.msra.mxu0 0.0
  %679 = vmatprep.subr.mxu0 0.0
  %680 = vmatpush1.msra.mxu0 0.0
  %681 = vmatprep.subr.mxu0 0.0
  %682 = vmatpush1.msra.mxu0 0.0
  %683 = vmatprep.subr.mxu0 0.0
  %684 = vmatpush1.msra.mxu0 0.0
  %685 = vmatprep.subr.mxu0 0.0
  %686 = vmatpush1.msra.mxu0 0.0
  %687 = vmatprep.subr.mxu0 0.0
  %688 = vmatpush1.msra.mxu0 0.0
  %689 = vmatprep.subr.mxu0 0.0
  %690 = vmatpush1.msra.mxu0 0.0
  %691 = vmatprep.subr.mxu0 0.0
  %692 = vmatpush1.msra.mxu0 0.0
  %693 = vmatprep.subr.mxu0 0.0
  %694 = vmatpush1.msra.mxu0 0.0
  %695 = vmatprep.subr.mxu0 0.0
  %696 = vmatpush1.msra.mxu0 0.0
  %697 = vmatprep.subr.mxu0 0.0
  %698 = vmatpush1.msra.mxu0 0.0
  %699 = vmatprep.subr.mxu0 0.0
  %700 = vmatpush1.msra.mxu0 0.0
  %701 = vmatprep.mubr.f32.mxu0 0.0
  %702 = vmatmul.mubr.f32.gmra.mrb[0].mxu0 %v351
  %v703 = vpop.f32.mrb[0].mxu0
  %v704 = vadd.f32 0.0, %v703
  %v705 = vpop.f32.mrb[0].mxu0
  %706 = vdwg.mxu0
  %v707 = vlaneseq
  %v708 = vand.u32 %v707, 127
  %v709 = vadd.s32 %v708, 128
  %v710 = vadd.s32 %v708, 256
  %v711 = vadd.s32 %v708, 384
  %v712 = vadd.s32 %v708, 512
  %v713 = vadd.s32 %v708, 640
  %v714 = vadd.s32 %v708, 768
  %v715 = vadd.s32 %v708, 896
  %v716 = vadd.s32 %v708, 1024
  %v717 = vand.u32 %v708, 511
  %v718 = vand.u32 %v709, 511
  %v719 = vand.u32 %v710, 511
  %v720 = vand.u32 %v711, 511
  %v721 = vand.u32 %v712, 511
  %v722 = vand.u32 %v713, 511
  %v723 = vand.u32 %v714, 511
  %v724 = vand.u32 %v715, 511
  %v725 = vand.u32 %v716, 511
  %v726 = vshra.s32 %v717, 4
  %v727 = vshra.s32 %v718, 4
  %v728 = vshra.s32 %v719, 4
  %v729 = vshra.s32 %v720, 4
  %v730 = vshra.s32 %v721, 4
  %v731 = vshra.s32 %v722, 4
  %v732 = vshra.s32 %v723, 4
  %v733 = vshra.s32 %v724, 4
  %v734 = vshra.s32 %v725, 4
  %vm735 = vcmp.lt.s32.totalorder %v726, 14
  %vm736 = vcmp.lt.s32.totalorder %v727, 14
  %vm737 = vcmp.lt.s32.totalorder %v728, 14
  %vm738 = vcmp.lt.s32.totalorder %v729, 14
  %vm739 = vcmp.lt.s32.totalorder %v730, 14
  %vm740 = vcmp.lt.s32.totalorder %v731, 14
  %vm741 = vcmp.lt.s32.totalorder %v732, 14
  %vm742 = vcmp.lt.s32.totalorder %v733, 14
  %vm743 = vcmp.lt.s32.totalorder %v734, 14
  %v744 = vand.u32 %v717, 15
  %v745 = vand.u32 %v718, 15
  %v746 = vand.u32 %v719, 15
  %v747 = vand.u32 %v720, 15
  %v748 = vand.u32 %v721, 15
  %v749 = vand.u32 %v722, 15
  %v750 = vand.u32 %v723, 15
  %v751 = vand.u32 %v724, 15
  %v752 = vand.u32 %v725, 15
  %vm753 = vcmp.lt.s32.totalorder %v744, 14
  %vm754 = vcmp.lt.s32.totalorder %v745, 14
  %vm755 = vcmp.lt.s32.totalorder %v746, 14
  %vm756 = vcmp.lt.s32.totalorder %v747, 14
  %vm757 = vcmp.lt.s32.totalorder %v748, 14
  %vm758 = vcmp.lt.s32.totalorder %v749, 14
  %vm759 = vcmp.lt.s32.totalorder %v750, 14
  %vm760 = vcmp.lt.s32.totalorder %v751, 14
  %vm761 = vcmp.lt.s32.totalorder %v752, 14
  %vm762 = vmand %vm735, %vm753
  %vm763 = vmand %vm736, %vm754
  %vm764 = vmand %vm737, %vm755
  %vm765 = vmand %vm738, %vm756
  %vm766 = vmand %vm739, %vm757
  %vm767 = vmand %vm740, %vm758
  %vm768 = vmand %vm741, %vm759
  %vm769 = vmand %vm742, %vm760
  %vm770 = vmand %vm743, %vm761
  %vm771 = vcmp.lt.s32.totalorder %v708, 1024
  %vm772 = vcmp.lt.s32.totalorder %v709, 1024
  %vm773 = vcmp.lt.s32.totalorder %v710, 1024
  %vm774 = vcmp.lt.s32.totalorder %v711, 1024
  %vm775 = vcmp.lt.s32.totalorder %v712, 1024
  %vm776 = vcmp.lt.s32.totalorder %v713, 1024
  %vm777 = vcmp.lt.s32.totalorder %v714, 1024
  %vm778 = vcmp.lt.s32.totalorder %v715, 1024
  %vm779 = vcmp.lt.s32.totalorder %v716, 1024
  %vm780 = vmand %vm762, %vm771
  %vm781 = vmand %vm763, %vm772
  %vm782 = vmand %vm764, %vm773
  %vm783 = vmand %vm765, %vm774
  %vm784 = vmand %vm766, %vm775
  %vm785 = vmand %vm767, %vm776
  %vm786 = vmand %vm768, %vm777
  %vm787 = vmand %vm769, %vm778
  %vm788 = vmand %vm770, %vm779
  %v789 = vsel %vm780, 1, 0
  %v790 = vsel %vm781, 1, 0
  %v791 = vsel %vm782, 1, 0
  %v792 = vsel %vm783, 1, 0
  %v793 = vsel %vm784, 1, 0
  %v794 = vsel %vm785, 1, 0
  %v795 = vsel %vm786, 1, 0
  %v796 = vsel %vm787, 1, 0
  %v797 = vsel %vm788, 1, 0
  %v798 = vcvt.s32.f32 %v789
  %v799 = vcvt.s32.f32 %v790
  %v800 = vcvt.s32.f32 %v791
  %v801 = vcvt.s32.f32 %v792
  %v802 = vcvt.s32.f32 %v793
  %v803 = vcvt.s32.f32 %v794
  %v804 = vcvt.s32.f32 %v795
  %v805 = vcvt.s32.f32 %v796
  %v806 = vcvt.s32.f32 %v797
  %v807 = vmul.f32 %v420, %v798
  %v808 = vmul.f32 %v422, %v799
  %v809 = vmul.f32 %v491, %v800
  %v810 = vmul.f32 %v493, %v801
  %v811 = vmul.f32 %v562, %v802
  %v812 = vmul.f32 %v564, %v803
  %v813 = vmul.f32 %v633, %v804
  %v814 = vmul.f32 %v635, %v805
  %v815 = vmul.f32 %v704, %v806
  %v816 = vmul.f32 %v807, %v807
  %v817 = vmul.f32 %v808, %v808
  %v818 = vmul.f32 %v809, %v809
  %v819 = vmul.f32 %v810, %v810
  %v820 = vmul.f32 %v811, %v811
  %v821 = vmul.f32 %v812, %v812
  %v822 = vmul.f32 %v813, %v813
  %v823 = vmul.f32 %v814, %v814
  %v824 = vmul.f32 %v815, %v815
  %v825 = vadd.f32 %v807, %v808
  %v826 = vadd.f32 %v825, %v809
  %v827 = vadd.f32 %v826, %v810
  %v828 = vadd.f32 %v827, %v811
  %v829 = vadd.f32 %v828, %v812
  %v830 = vadd.f32 %v829, %v813
  %v831 = vadd.f32 %v830, %v814
  %v832 = vadd.f32 %v831, %v815
  %833 = vadd.xlane.f32.xlu0 %v832
  %v834 = vpop.xlane.xlu0 %833
  %v835 = vadd.f32 %v816, %v817
  %v836 = vadd.f32 %v835, %v818
  %v837 = vadd.f32 %v836, %v819
  %v838 = vadd.f32 %v837, %v820
  %v839 = vadd.f32 %v838, %v821
  %v840 = vadd.f32 %v839, %v822
  %v841 = vadd.f32 %v840, %v823
  %v842 = vadd.f32 %v841, %v824
  %843 = vadd.xlane.f32.xlu0 %v842
  %v844 = vpop.xlane.xlu0 %843
  %v845 = vmul.f32 %v834, 0.0025510204
  %v846 = vmul.f32 %v844, 0.0025510204
  %v847 = vmul.f32 %v845, %v845
  %v848 = vsub.f32 %v846, %v847
  %v849 = vadd.f32 %v848, 1e-05
  %v850 = vrsqrt.pop %v849
  %v851 = vmul.f32 %v26, %v850
  %853 = vrot.lane.b32.xlu0 %v26, 127
  %v854 = vpop.permute.xlu0 %853
  %v856 = vmul.f32 %v851, %v854
  %v857 = vmul.f32 %v851, %v851
  %v858 = vmul.f32 %v857, %v848
  %v859 = vadd.f32 %v858, 1e-05
  %v860 = vrsqrt.pop %v859
  %v861 = vmul.f32 %v856, %v860
  %v862 = vsub.f32 %v420, %v845
  %v863 = vsub.f32 %v422, %v845
  %v864 = vsub.f32 %v491, %v845
  %v865 = vsub.f32 %v493, %v845
  %v866 = vsub.f32 %v562, %v845
  %v867 = vsub.f32 %v564, %v845
  %v868 = vsub.f32 %v633, %v845
  %v869 = vsub.f32 %v635, %v845
  %v870 = vsub.f32 %v704, %v845
  %872 = vset.pattern.permute.xlu0 0
  %873 = vperm.xlu0 %872, %v861
  %v874 = vpop.permute.xlu0 %873
  %v876 = vmul.f32 %v862, %v874
  %v877 = vmul.f32 %v863, %v874
  %v878 = vmul.f32 %v864, %v874
  %v879 = vmul.f32 %v865, %v874
  %v880 = vmul.f32 %v866, %v874
  %v881 = vmul.f32 %v867, %v874
  %v882 = vmul.f32 %v868, %v874
  %v883 = vmul.f32 %v869, %v874
  %v884 = vmul.f32 %v870, %v874
  %885 = vset.pattern.permute.xlu0 2
  %886 = vperm.xlu0 %885, %v26
  %v887 = vpop.permute.xlu0 %886
  %v889 = vadd.f32 %v876, %v887
  %v890 = vadd.f32 %v877, %v887
  %v891 = vadd.f32 %v878, %v887
  %v892 = vadd.f32 %v879, %v887
  %v893 = vadd.f32 %v880, %v887
  %v894 = vadd.f32 %v881, %v887
  %v895 = vadd.f32 %v882, %v887
  %v896 = vadd.f32 %v883, %v887
  %v897 = vadd.f32 %v884, %v887
  %v898 = vmax.f32 %v889, 0.0
  %v899 = vmax.f32 %v890, 0.0
  %v900 = vmax.f32 %v891, 0.0
  %v901 = vmax.f32 %v892, 0.0
  %v902 = vmax.f32 %v893, 0.0
  %v903 = vmax.f32 %v894, 0.0
  %v904 = vmax.f32 %v895, 0.0
  %v905 = vmax.f32 %v896, 0.0
  %v906 = vmax.f32 %v897, 0.0
  %916 = vrot.lane.b32.xlu0 %v898, 127
  %v917 = vpop.permute.xlu0 %916
  %918 = vrot.lane.b32.xlu0 %v899, 127
  %v919 = vpop.permute.xlu0 %918
  %920 = vrot.lane.b32.xlu0 %v900, 127
  %v921 = vpop.permute.xlu0 %920
  %922 = vrot.lane.b32.xlu0 %v901, 127
  %v923 = vpop.permute.xlu0 %922
  %924 = vrot.lane.b32.xlu0 %v902, 127
  %v925 = vpop.permute.xlu0 %924
  %926 = vrot.lane.b32.xlu0 %v903, 127
  %v927 = vpop.permute.xlu0 %926
  %928 = vrot.lane.b32.xlu0 %v904, 127
  %v929 = vpop.permute.xlu0 %928
  %930 = vrot.lane.b32.xlu0 %v905, 127
  %v931 = vpop.permute.xlu0 %930
  %932 = vrot.lane.b32.xlu0 %v906, 127
  %v933 = vpop.permute.xlu0 %932
  %v934 = vsel %vm57, %v917, %v919
  %v935 = vsel %vm57, %v919, %v921
  %v936 = vsel %vm57, %v921, %v923
  %v937 = vsel %vm57, %v923, %v925
  %v938 = vsel %vm57, %v925, %v927
  %v939 = vsel %vm57, %v927, %v929
  %v940 = vsel %vm57, %v929, %v931
  %v941 = vsel %vm57, %v931, %v933
  %950 = vrot.lane.b32.xlu0 %v898, 126
  %v951 = vpop.permute.xlu0 %950
  %952 = vrot.lane.b32.xlu0 %v899, 126
  %v953 = vpop.permute.xlu0 %952
  %954 = vrot.lane.b32.xlu0 %v900, 126
  %v955 = vpop.permute.xlu0 %954
  %956 = vrot.lane.b32.xlu0 %v901, 126
  %v957 = vpop.permute.xlu0 %956
  %958 = vrot.lane.b32.xlu0 %v902, 126
  %v959 = vpop.permute.xlu0 %958
  %960 = vrot.lane.b32.xlu0 %v903, 126
  %v961 = vpop.permute.xlu0 %960
  %962 = vrot.lane.b32.xlu0 %v904, 126
  %v963 = vpop.permute.xlu0 %962
  %964 = vrot.lane.b32.xlu0 %v905, 126
  %v965 = vpop.permute.xlu0 %964
  %966 = vrot.lane.b32.xlu0 %v906, 126
  %v967 = vpop.permute.xlu0 %966
  %v968 = vsel %vm96, %v951, %v953
  %v969 = vsel %vm96, %v953, %v955
  %v970 = vsel %vm96, %v955, %v957
  %v971 = vsel %vm96, %v957, %v959
  %v972 = vsel %vm96, %v959, %v961
  %v973 = vsel %vm96, %v961, %v963
  %v974 = vsel %vm96, %v963, %v965
  %v975 = vsel %vm96, %v965, %v967
  %984 = vrot.lane.b32.xlu0 %v898, 112
  %v985 = vpop.permute.xlu0 %984
  %986 = vrot.lane.b32.xlu0 %v899, 112
  %v987 = vpop.permute.xlu0 %986
  %988 = vrot.lane.b32.xlu0 %v900, 112
  %v989 = vpop.permute.xlu0 %988
  %990 = vrot.lane.b32.xlu0 %v901, 112
  %v991 = vpop.permute.xlu0 %990
  %992 = vrot.lane.b32.xlu0 %v902, 112
  %v993 = vpop.permute.xlu0 %992
  %994 = vrot.lane.b32.xlu0 %v903, 112
  %v995 = vpop.permute.xlu0 %994
  %996 = vrot.lane.b32.xlu0 %v904, 112
  %v997 = vpop.permute.xlu0 %996
  %998 = vrot.lane.b32.xlu0 %v905, 112
  %v999 = vpop.permute.xlu0 %998
  %1000 = vrot.lane.b32.xlu0 %v906, 112
  %v1001 = vpop.permute.xlu0 %1000
  %v1002 = vsel %vm135, %v985, %v987
  %v1003 = vsel %vm135, %v987, %v989
  %v1004 = vsel %vm135, %v989, %v991
  %v1005 = vsel %vm135, %v991, %v993
  %v1006 = vsel %vm135, %v993, %v995
  %v1007 = vsel %vm135, %v995, %v997
  %v1008 = vsel %vm135, %v997, %v999
  %v1009 = vsel %vm135, %v999, %v1001
  %1018 = vrot.lane.b32.xlu0 %v898, 111
  %v1019 = vpop.permute.xlu0 %1018
  %1020 = vrot.lane.b32.xlu0 %v899, 111
  %v1021 = vpop.permute.xlu0 %1020
  %1022 = vrot.lane.b32.xlu0 %v900, 111
  %v1023 = vpop.permute.xlu0 %1022
  %1024 = vrot.lane.b32.xlu0 %v901, 111
  %v1025 = vpop.permute.xlu0 %1024
  %1026 = vrot.lane.b32.xlu0 %v902, 111
  %v1027 = vpop.permute.xlu0 %1026
  %1028 = vrot.lane.b32.xlu0 %v903, 111
  %v1029 = vpop.permute.xlu0 %1028
  %1030 = vrot.lane.b32.xlu0 %v904, 111
  %v1031 = vpop.permute.xlu0 %1030
  %1032 = vrot.lane.b32.xlu0 %v905, 111
  %v1033 = vpop.permute.xlu0 %1032
  %1034 = vrot.lane.b32.xlu0 %v906, 111
  %v1035 = vpop.permute.xlu0 %1034
  %v1036 = vsel %vm174, %v1019, %v1021
  %v1037 = vsel %vm174, %v1021, %v1023
  %v1038 = vsel %vm174, %v1023, %v1025
  %v1039 = vsel %vm174, %v1025, %v1027
  %v1040 = vsel %vm174, %v1027, %v1029
  %v1041 = vsel %vm174, %v1029, %v1031
  %v1042 = vsel %vm174, %v1031, %v1033
  %v1043 = vsel %vm174, %v1033, %v1035
  %1052 = vrot.lane.b32.xlu0 %v898, 110
  %v1053 = vpop.permute.xlu0 %1052
  %1054 = vrot.lane.b32.xlu0 %v899, 110
  %v1055 = vpop.permute.xlu0 %1054
  %1056 = vrot.lane.b32.xlu0 %v900, 110
  %v1057 = vpop.permute.xlu0 %1056
  %1058 = vrot.lane.b32.xlu0 %v901, 110
  %v1059 = vpop.permute.xlu0 %1058
  %1060 = vrot.lane.b32.xlu0 %v902, 110
  %v1061 = vpop.permute.xlu0 %1060
  %1062 = vrot.lane.b32.xlu0 %v903, 110
  %v1063 = vpop.permute.xlu0 %1062
  %1064 = vrot.lane.b32.xlu0 %v904, 110
  %v1065 = vpop.permute.xlu0 %1064
  %1066 = vrot.lane.b32.xlu0 %v905, 110
  %v1067 = vpop.permute.xlu0 %1066
  %1068 = vrot.lane.b32.xlu0 %v906, 110
  %v1069 = vpop.permute.xlu0 %1068
  %v1070 = vsel %vm213, %v1053, %v1055
  %v1071 = vsel %vm213, %v1055, %v1057
  %v1072 = vsel %vm213, %v1057, %v1059
  %v1073 = vsel %vm213, %v1059, %v1061
  %v1074 = vsel %vm213, %v1061, %v1063
  %v1075 = vsel %vm213, %v1063, %v1065
  %v1076 = vsel %vm213, %v1065, %v1067
  %v1077 = vsel %vm213, %v1067, %v1069
  %1086 = vrot.lane.b32.xlu0 %v898, 96
  %v1087 = vpop.permute.xlu0 %1086
  %1088 = vrot.lane.b32.xlu0 %v899, 96
  %v1089 = vpop.permute.xlu0 %1088
  %1090 = vrot.lane.b32.xlu0 %v900, 96
  %v1091 = vpop.permute.xlu0 %1090
  %1092 = vrot.lane.b32.xlu0 %v901, 96
  %v1093 = vpop.permute.xlu0 %1092
  %1094 = vrot.lane.b32.xlu0 %v902, 96
  %v1095 = vpop.permute.xlu0 %1094
  %1096 = vrot.lane.b32.xlu0 %v903, 96
  %v1097 = vpop.permute.xlu0 %1096
  %1098 = vrot.lane.b32.xlu0 %v904, 96
  %v1099 = vpop.permute.xlu0 %1098
  %1100 = vrot.lane.b32.xlu0 %v905, 96
  %v1101 = vpop.permute.xlu0 %1100
  %1102 = vrot.lane.b32.xlu0 %v906, 96
  %v1103 = vpop.permute.xlu0 %1102
  %v1104 = vsel %vm252, %v1087, %v1089
  %v1105 = vsel %vm252, %v1089, %v1091
  %v1106 = vsel %vm252, %v1091, %v1093
  %v1107 = vsel %vm252, %v1093, %v1095
  %v1108 = vsel %vm252, %v1095, %v1097
  %v1109 = vsel %vm252, %v1097, %v1099
  %v1110 = vsel %vm252, %v1099, %v1101
  %v1111 = vsel %vm252, %v1101, %v1103
  %1120 = vrot.lane.b32.xlu0 %v898, 95
  %v1121 = vpop.permute.xlu0 %1120
  %1122 = vrot.lane.b32.xlu0 %v899, 95
  %v1123 = vpop.permute.xlu0 %1122
  %1124 = vrot.lane.b32.xlu0 %v900, 95
  %v1125 = vpop.permute.xlu0 %1124
  %1126 = vrot.lane.b32.xlu0 %v901, 95
  %v1127 = vpop.permute.xlu0 %1126
  %1128 = vrot.lane.b32.xlu0 %v902, 95
  %v1129 = vpop.permute.xlu0 %1128
  %1130 = vrot.lane.b32.xlu0 %v903, 95
  %v1131 = vpop.permute.xlu0 %1130
  %1132 = vrot.lane.b32.xlu0 %v904, 95
  %v1133 = vpop.permute.xlu0 %1132
  %1134 = vrot.lane.b32.xlu0 %v905, 95
  %v1135 = vpop.permute.xlu0 %1134
  %1136 = vrot.lane.b32.xlu0 %v906, 95
  %v1137 = vpop.permute.xlu0 %1136
  %v1138 = vsel %vm291, %v1121, %v1123
  %v1139 = vsel %vm291, %v1123, %v1125
  %v1140 = vsel %vm291, %v1125, %v1127
  %v1141 = vsel %vm291, %v1127, %v1129
  %v1142 = vsel %vm291, %v1129, %v1131
  %v1143 = vsel %vm291, %v1131, %v1133
  %v1144 = vsel %vm291, %v1133, %v1135
  %v1145 = vsel %vm291, %v1135, %v1137
  %1154 = vrot.lane.b32.xlu0 %v898, 94
  %v1155 = vpop.permute.xlu0 %1154
  %1156 = vrot.lane.b32.xlu0 %v899, 94
  %v1157 = vpop.permute.xlu0 %1156
  %1158 = vrot.lane.b32.xlu0 %v900, 94
  %v1159 = vpop.permute.xlu0 %1158
  %1160 = vrot.lane.b32.xlu0 %v901, 94
  %v1161 = vpop.permute.xlu0 %1160
  %1162 = vrot.lane.b32.xlu0 %v902, 94
  %v1163 = vpop.permute.xlu0 %1162
  %1164 = vrot.lane.b32.xlu0 %v903, 94
  %v1165 = vpop.permute.xlu0 %1164
  %1166 = vrot.lane.b32.xlu0 %v904, 94
  %v1167 = vpop.permute.xlu0 %1166
  %1168 = vrot.lane.b32.xlu0 %v905, 94
  %v1169 = vpop.permute.xlu0 %1168
  %1170 = vrot.lane.b32.xlu0 %v906, 94
  %v1171 = vpop.permute.xlu0 %1170
  %v1172 = vsel %vm330, %v1155, %v1157
  %v1173 = vsel %vm330, %v1157, %v1159
  %v1174 = vsel %vm330, %v1159, %v1161
  %v1175 = vsel %vm330, %v1161, %v1163
  %v1176 = vsel %vm330, %v1163, %v1165
  %v1177 = vsel %vm330, %v1165, %v1167
  %v1178 = vsel %vm330, %v1167, %v1169
  %v1179 = vsel %vm330, %v1169, %v1171
  %v1189 = vsel %vm349, %v25, 0
  %1191 = vmatprep.subr.mxu0 %v899
  %1192 = vmatpush1.msra.mxu0 %v898
  %1193 = vmatprep.subr.mxu0 %v935
  %1194 = vmatpush1.msra.mxu0 %v934
  %1195 = vmatprep.subr.mxu0 %v969
  %1196 = vmatpush1.msra.mxu0 %v968
  %1197 = vmatprep.subr.mxu0 %v1003
  %1198 = vmatpush1.msra.mxu0 %v1002
  %1199 = vmatprep.subr.mxu0 %v1037
  %1200 = vmatpush1.msra.mxu0 %v1036
  %1201 = vmatprep.subr.mxu0 %v1071
  %1202 = vmatpush1.msra.mxu0 %v1070
  %1203 = vmatprep.subr.mxu0 %v1105
  %1204 = vmatpush1.msra.mxu0 %v1104
  %1205 = vmatprep.subr.mxu0 %v1139
  %1206 = vmatpush1.msra.mxu0 %v1138
  %1207 = vmatprep.subr.mxu0 %v1173
  %1208 = vmatpush1.msra.mxu0 %v1172
  %1209 = vmatprep.subr.mxu0 0.0
  %1210 = vmatpush1.msra.mxu0 0.0
  %1211 = vmatprep.subr.mxu0 0.0
  %1212 = vmatpush1.msra.mxu0 0.0
  %1213 = vmatprep.subr.mxu0 0.0
  %1214 = vmatpush1.msra.mxu0 0.0
  %1215 = vmatprep.subr.mxu0 0.0
  %1216 = vmatpush1.msra.mxu0 0.0
  %1217 = vmatprep.subr.mxu0 0.0
  %1218 = vmatpush1.msra.mxu0 0.0
  %1219 = vmatprep.subr.mxu0 0.0
  %1220 = vmatpush1.msra.mxu0 0.0
  %1221 = vmatprep.subr.mxu0 0.0
  %1222 = vmatpush1.msra.mxu0 0.0
  %1223 = vmatprep.subr.mxu0 0.0
  %1224 = vmatpush1.msra.mxu0 0.0
  %1225 = vmatprep.subr.mxu0 0.0
  %1226 = vmatpush1.msra.mxu0 0.0
  %1227 = vmatprep.subr.mxu0 0.0
  %1228 = vmatpush1.msra.mxu0 0.0
  %1229 = vmatprep.subr.mxu0 0.0
  %1230 = vmatpush1.msra.mxu0 0.0
  %1231 = vmatprep.subr.mxu0 0.0
  %1232 = vmatpush1.msra.mxu0 0.0
  %1233 = vmatprep.subr.mxu0 0.0
  %1234 = vmatpush1.msra.mxu0 0.0
  %1235 = vmatprep.subr.mxu0 0.0
  %1236 = vmatpush1.msra.mxu0 0.0
  %1237 = vmatprep.subr.mxu0 0.0
  %1238 = vmatpush1.msra.mxu0 0.0
  %1239 = vmatprep.subr.mxu0 0.0
  %1240 = vmatpush1.msra.mxu0 0.0
  %1241 = vmatprep.subr.mxu0 0.0
  %1242 = vmatpush1.msra.mxu0 0.0
  %1243 = vmatprep.subr.mxu0 0.0
  %1244 = vmatpush1.msra.mxu0 0.0
  %1245 = vmatprep.subr.mxu0 0.0
  %1246 = vmatpush1.msra.mxu0 0.0
  %1247 = vmatprep.subr.mxu0 0.0
  %1248 = vmatpush1.msra.mxu0 0.0
  %1249 = vmatprep.subr.mxu0 0.0
  %1250 = vmatpush1.msra.mxu0 0.0
  %1251 = vmatprep.subr.mxu0 0.0
  %1252 = vmatpush1.msra.mxu0 0.0
  %1253 = vmatprep.subr.mxu0 0.0
  %1254 = vmatpush1.msra.mxu0 0.0
  %1255 = vmatprep.mubr.f32.mxu0 0.0
  %1256 = vmatmul.mubr.f32.gmra.mrb[0].mxu0 %v1189
  %v1257 = vpop.f32.mrb[0].mxu0
  %v1258 = vadd.f32 0.0, %v1257
  %v1259 = vpop.f32.mrb[0].mxu0
  %v1260 = vadd.f32 0.0, %v1259
  %1261 = vdwg.mxu0
  %1262 = vmatprep.subr.mxu0 %v901
  %1263 = vmatpush1.msra.mxu0 %v900
  %1264 = vmatprep.subr.mxu0 %v937
  %1265 = vmatpush1.msra.mxu0 %v936
  %1266 = vmatprep.subr.mxu0 %v971
  %1267 = vmatpush1.msra.mxu0 %v970
  %1268 = vmatprep.subr.mxu0 %v1005
  %1269 = vmatpush1.msra.mxu0 %v1004
  %1270 = vmatprep.subr.mxu0 %v1039
  %1271 = vmatpush1.msra.mxu0 %v1038
  %1272 = vmatprep.subr.mxu0 %v1073
  %1273 = vmatpush1.msra.mxu0 %v1072
  %1274 = vmatprep.subr.mxu0 %v1107
  %1275 = vmatpush1.msra.mxu0 %v1106
  %1276 = vmatprep.subr.mxu0 %v1141
  %1277 = vmatpush1.msra.mxu0 %v1140
  %1278 = vmatprep.subr.mxu0 %v1175
  %1279 = vmatpush1.msra.mxu0 %v1174
  %1280 = vmatprep.subr.mxu0 0.0
  %1281 = vmatpush1.msra.mxu0 0.0
  %1282 = vmatprep.subr.mxu0 0.0
  %1283 = vmatpush1.msra.mxu0 0.0
  %1284 = vmatprep.subr.mxu0 0.0
  %1285 = vmatpush1.msra.mxu0 0.0
  %1286 = vmatprep.subr.mxu0 0.0
  %1287 = vmatpush1.msra.mxu0 0.0
  %1288 = vmatprep.subr.mxu0 0.0
  %1289 = vmatpush1.msra.mxu0 0.0
  %1290 = vmatprep.subr.mxu0 0.0
  %1291 = vmatpush1.msra.mxu0 0.0
  %1292 = vmatprep.subr.mxu0 0.0
  %1293 = vmatpush1.msra.mxu0 0.0
  %1294 = vmatprep.subr.mxu0 0.0
  %1295 = vmatpush1.msra.mxu0 0.0
  %1296 = vmatprep.subr.mxu0 0.0
  %1297 = vmatpush1.msra.mxu0 0.0
  %1298 = vmatprep.subr.mxu0 0.0
  %1299 = vmatpush1.msra.mxu0 0.0
  %1300 = vmatprep.subr.mxu0 0.0
  %1301 = vmatpush1.msra.mxu0 0.0
  %1302 = vmatprep.subr.mxu0 0.0
  %1303 = vmatpush1.msra.mxu0 0.0
  %1304 = vmatprep.subr.mxu0 0.0
  %1305 = vmatpush1.msra.mxu0 0.0
  %1306 = vmatprep.subr.mxu0 0.0
  %1307 = vmatpush1.msra.mxu0 0.0
  %1308 = vmatprep.subr.mxu0 0.0
  %1309 = vmatpush1.msra.mxu0 0.0
  %1310 = vmatprep.subr.mxu0 0.0
  %1311 = vmatpush1.msra.mxu0 0.0
  %1312 = vmatprep.subr.mxu0 0.0
  %1313 = vmatpush1.msra.mxu0 0.0
  %1314 = vmatprep.subr.mxu0 0.0
  %1315 = vmatpush1.msra.mxu0 0.0
  %1316 = vmatprep.subr.mxu0 0.0
  %1317 = vmatpush1.msra.mxu0 0.0
  %1318 = vmatprep.subr.mxu0 0.0
  %1319 = vmatpush1.msra.mxu0 0.0
  %1320 = vmatprep.subr.mxu0 0.0
  %1321 = vmatpush1.msra.mxu0 0.0
  %1322 = vmatprep.subr.mxu0 0.0
  %1323 = vmatpush1.msra.mxu0 0.0
  %1324 = vmatprep.subr.mxu0 0.0
  %1325 = vmatpush1.msra.mxu0 0.0
  %1326 = vmatprep.mubr.f32.mxu0 0.0
  %1327 = vmatmul.mubr.f32.gmra.mrb[0].mxu0 %v1189
  %v1328 = vpop.f32.mrb[0].mxu0
  %v1329 = vadd.f32 0.0, %v1328
  %v1330 = vpop.f32.mrb[0].mxu0
  %v1331 = vadd.f32 0.0, %v1330
  %1332 = vdwg.mxu0
  %1333 = vmatprep.subr.mxu0 %v903
  %1334 = vmatpush1.msra.mxu0 %v902
  %1335 = vmatprep.subr.mxu0 %v939
  %1336 = vmatpush1.msra.mxu0 %v938
  %1337 = vmatprep.subr.mxu0 %v973
  %1338 = vmatpush1.msra.mxu0 %v972
  %1339 = vmatprep.subr.mxu0 %v1007
  %1340 = vmatpush1.msra.mxu0 %v1006
  %1341 = vmatprep.subr.mxu0 %v1041
  %1342 = vmatpush1.msra.mxu0 %v1040
  %1343 = vmatprep.subr.mxu0 %v1075
  %1344 = vmatpush1.msra.mxu0 %v1074
  %1345 = vmatprep.subr.mxu0 %v1109
  %1346 = vmatpush1.msra.mxu0 %v1108
  %1347 = vmatprep.subr.mxu0 %v1143
  %1348 = vmatpush1.msra.mxu0 %v1142
  %1349 = vmatprep.subr.mxu0 %v1177
  %1350 = vmatpush1.msra.mxu0 %v1176
  %1351 = vmatprep.subr.mxu0 0.0
  %1352 = vmatpush1.msra.mxu0 0.0
  %1353 = vmatprep.subr.mxu0 0.0
  %1354 = vmatpush1.msra.mxu0 0.0
  %1355 = vmatprep.subr.mxu0 0.0
  %1356 = vmatpush1.msra.mxu0 0.0
  %1357 = vmatprep.subr.mxu0 0.0
  %1358 = vmatpush1.msra.mxu0 0.0
  %1359 = vmatprep.subr.mxu0 0.0
  %1360 = vmatpush1.msra.mxu0 0.0
  %1361 = vmatprep.subr.mxu0 0.0
  %1362 = vmatpush1.msra.mxu0 0.0
  %1363 = vmatprep.subr.mxu0 0.0
  %1364 = vmatpush1.msra.mxu0 0.0
  %1365 = vmatprep.subr.mxu0 0.0
  %1366 = vmatpush1.msra.mxu0 0.0
  %1367 = vmatprep.subr.mxu0 0.0
  %1368 = vmatpush1.msra.mxu0 0.0
  %1369 = vmatprep.subr.mxu0 0.0
  %1370 = vmatpush1.msra.mxu0 0.0
  %1371 = vmatprep.subr.mxu0 0.0
  %1372 = vmatpush1.msra.mxu0 0.0
  %1373 = vmatprep.subr.mxu0 0.0
  %1374 = vmatpush1.msra.mxu0 0.0
  %1375 = vmatprep.subr.mxu0 0.0
  %1376 = vmatpush1.msra.mxu0 0.0
  %1377 = vmatprep.subr.mxu0 0.0
  %1378 = vmatpush1.msra.mxu0 0.0
  %1379 = vmatprep.subr.mxu0 0.0
  %1380 = vmatpush1.msra.mxu0 0.0
  %1381 = vmatprep.subr.mxu0 0.0
  %1382 = vmatpush1.msra.mxu0 0.0
  %1383 = vmatprep.subr.mxu0 0.0
  %1384 = vmatpush1.msra.mxu0 0.0
  %1385 = vmatprep.subr.mxu0 0.0
  %1386 = vmatpush1.msra.mxu0 0.0
  %1387 = vmatprep.subr.mxu0 0.0
  %1388 = vmatpush1.msra.mxu0 0.0
  %1389 = vmatprep.subr.mxu0 0.0
  %1390 = vmatpush1.msra.mxu0 0.0
  %1391 = vmatprep.subr.mxu0 0.0
  %1392 = vmatpush1.msra.mxu0 0.0
  %1393 = vmatprep.subr.mxu0 0.0
  %1394 = vmatpush1.msra.mxu0 0.0
  %1395 = vmatprep.subr.mxu0 0.0
  %1396 = vmatpush1.msra.mxu0 0.0
  %1397 = vmatprep.mubr.f32.mxu0 0.0
  %1398 = vmatmul.mubr.f32.gmra.mrb[0].mxu0 %v1189
  %v1399 = vpop.f32.mrb[0].mxu0
  %v1400 = vadd.f32 0.0, %v1399
  %v1401 = vpop.f32.mrb[0].mxu0
  %v1402 = vadd.f32 0.0, %v1401
  %1403 = vdwg.mxu0
  %1404 = vmatprep.subr.mxu0 %v905
  %1405 = vmatpush1.msra.mxu0 %v904
  %1406 = vmatprep.subr.mxu0 %v941
  %1407 = vmatpush1.msra.mxu0 %v940
  %1408 = vmatprep.subr.mxu0 %v975
  %1409 = vmatpush1.msra.mxu0 %v974
  %1410 = vmatprep.subr.mxu0 %v1009
  %1411 = vmatpush1.msra.mxu0 %v1008
  %1412 = vmatprep.subr.mxu0 %v1043
  %1413 = vmatpush1.msra.mxu0 %v1042
  %1414 = vmatprep.subr.mxu0 %v1077
  %1415 = vmatpush1.msra.mxu0 %v1076
  %1416 = vmatprep.subr.mxu0 %v1111
  %1417 = vmatpush1.msra.mxu0 %v1110
  %1418 = vmatprep.subr.mxu0 %v1145
  %1419 = vmatpush1.msra.mxu0 %v1144
  %1420 = vmatprep.subr.mxu0 %v1179
  %1421 = vmatpush1.msra.mxu0 %v1178
  %1422 = vmatprep.subr.mxu0 0.0
  %1423 = vmatpush1.msra.mxu0 0.0
  %1424 = vmatprep.subr.mxu0 0.0
  %1425 = vmatpush1.msra.mxu0 0.0
  %1426 = vmatprep.subr.mxu0 0.0
  %1427 = vmatpush1.msra.mxu0 0.0
  %1428 = vmatprep.subr.mxu0 0.0
  %1429 = vmatpush1.msra.mxu0 0.0
  %1430 = vmatprep.subr.mxu0 0.0
  %1431 = vmatpush1.msra.mxu0 0.0
  %1432 = vmatprep.subr.mxu0 0.0
  %1433 = vmatpush1.msra.mxu0 0.0
  %1434 = vmatprep.subr.mxu0 0.0
  %1435 = vmatpush1.msra.mxu0 0.0
  %1436 = vmatprep.subr.mxu0 0.0
  %1437 = vmatpush1.msra.mxu0 0.0
  %1438 = vmatprep.subr.mxu0 0.0
  %1439 = vmatpush1.msra.mxu0 0.0
  %1440 = vmatprep.subr.mxu0 0.0
  %1441 = vmatpush1.msra.mxu0 0.0
  %1442 = vmatprep.subr.mxu0 0.0
  %1443 = vmatpush1.msra.mxu0 0.0
  %1444 = vmatprep.subr.mxu0 0.0
  %1445 = vmatpush1.msra.mxu0 0.0
  %1446 = vmatprep.subr.mxu0 0.0
  %1447 = vmatpush1.msra.mxu0 0.0
  %1448 = vmatprep.subr.mxu0 0.0
  %1449 = vmatpush1.msra.mxu0 0.0
  %1450 = vmatprep.subr.mxu0 0.0
  %1451 = vmatpush1.msra.mxu0 0.0
  %1452 = vmatprep.subr.mxu0 0.0
  %1453 = vmatpush1.msra.mxu0 0.0
  %1454 = vmatprep.subr.mxu0 0.0
  %1455 = vmatpush1.msra.mxu0 0.0
  %1456 = vmatprep.subr.mxu0 0.0
  %1457 = vmatpush1.msra.mxu0 0.0
  %1458 = vmatprep.subr.mxu0 0.0
  %1459 = vmatpush1.msra.mxu0 0.0
  %1460 = vmatprep.subr.mxu0 0.0
  %1461 = vmatpush1.msra.mxu0 0.0
  %1462 = vmatprep.subr.mxu0 0.0
  %1463 = vmatpush1.msra.mxu0 0.0
  %1464 = vmatprep.subr.mxu0 0.0
  %1465 = vmatpush1.msra.mxu0 0.0
  %1466 = vmatprep.subr.mxu0 0.0
  %1467 = vmatpush1.msra.mxu0 0.0
  %1468 = vmatprep.mubr.f32.mxu0 0.0
  %1469 = vmatmul.mubr.f32.gmra.mrb[0].mxu0 %v1189
  %v1470 = vpop.f32.mrb[0].mxu0
  %v1471 = vadd.f32 0.0, %v1470
  %v1472 = vpop.f32.mrb[0].mxu0
  %v1473 = vadd.f32 0.0, %v1472
  %1474 = vdwg.mxu0
  %vm1475 = vcmp.lt.s32.totalorder %v726, 12
  %vm1476 = vcmp.lt.s32.totalorder %v727, 12
  %vm1477 = vcmp.lt.s32.totalorder %v728, 12
  %vm1478 = vcmp.lt.s32.totalorder %v729, 12
  %vm1479 = vcmp.lt.s32.totalorder %v730, 12
  %vm1480 = vcmp.lt.s32.totalorder %v731, 12
  %vm1481 = vcmp.lt.s32.totalorder %v732, 12
  %vm1482 = vcmp.lt.s32.totalorder %v733, 12
  %vm1483 = vcmp.lt.s32.totalorder %v744, 12
  %vm1484 = vcmp.lt.s32.totalorder %v745, 12
  %vm1485 = vcmp.lt.s32.totalorder %v746, 12
  %vm1486 = vcmp.lt.s32.totalorder %v747, 12
  %vm1487 = vcmp.lt.s32.totalorder %v748, 12
  %vm1488 = vcmp.lt.s32.totalorder %v749, 12
  %vm1489 = vcmp.lt.s32.totalorder %v750, 12
  %vm1490 = vcmp.lt.s32.totalorder %v751, 12
  %vm1491 = vmand %vm1475, %vm1483
  %vm1492 = vmand %vm1476, %vm1484
  %vm1493 = vmand %vm1477, %vm1485
  %vm1494 = vmand %vm1478, %vm1486
  %vm1495 = vmand %vm1479, %vm1487
  %vm1496 = vmand %vm1480, %vm1488
  %vm1497 = vmand %vm1481, %vm1489
  %vm1498 = vmand %vm1482, %vm1490
  %vm1499 = vmand %vm1491, %vm771
  %vm1500 = vmand %vm1492, %vm772
  %vm1501 = vmand %vm1493, %vm773
  %vm1502 = vmand %vm1494, %vm774
  %vm1503 = vmand %vm1495, %vm775
  %vm1504 = vmand %vm1496, %vm776
  %vm1505 = vmand %vm1497, %vm777
  %vm1506 = vmand %vm1498, %vm778
  %v1507 = vsel %vm1499, 1, 0
  %v1508 = vsel %vm1500, 1, 0
  %v1509 = vsel %vm1501, 1, 0
  %v1510 = vsel %vm1502, 1, 0
  %v1511 = vsel %vm1503, 1, 0
  %v1512 = vsel %vm1504, 1, 0
  %v1513 = vsel %vm1505, 1, 0
  %v1514 = vsel %vm1506, 1, 0
  %v1515 = vcvt.s32.f32 %v1507
  %v1516 = vcvt.s32.f32 %v1508
  %v1517 = vcvt.s32.f32 %v1509
  %v1518 = vcvt.s32.f32 %v1510
  %v1519 = vcvt.s32.f32 %v1511
  %v1520 = vcvt.s32.f32 %v1512
  %v1521 = vcvt.s32.f32 %v1513
  %v1522 = vcvt.s32.f32 %v1514
  %v1523 = vmul.f32 %v1258, %v1515
  %v1524 = vmul.f32 %v1260, %v1516
  %v1525 = vmul.f32 %v1329, %v1517
  %v1526 = vmul.f32 %v1331, %v1518
  %v1527 = vmul.f32 %v1400, %v1519
  %v1528 = vmul.f32 %v1402, %v1520
  %v1529 = vmul.f32 %v1471, %v1521
  %v1530 = vmul.f32 %v1473, %v1522
  %v1531 = vmul.f32 %v1523, %v1523
  %v1532 = vmul.f32 %v1524, %v1524
  %v1533 = vmul.f32 %v1525, %v1525
  %v1534 = vmul.f32 %v1526, %v1526
  %v1535 = vmul.f32 %v1527, %v1527
  %v1536 = vmul.f32 %v1528, %v1528
  %v1537 = vmul.f32 %v1529, %v1529
  %v1538 = vmul.f32 %v1530, %v1530
  %v1539 = vadd.f32 %v1523, %v1524
  %v1540 = vadd.f32 %v1539, %v1525
  %v1541 = vadd.f32 %v1540, %v1526
  %v1542 = vadd.f32 %v1541, %v1527
  %v1543 = vadd.f32 %v1542, %v1528
  %v1544 = vadd.f32 %v1543, %v1529
  %v1545 = vadd.f32 %v1544, %v1530
  %1546 = vadd.xlane.f32.xlu0 %v1545
  %v1547 = vpop.xlane.xlu0 %1546
  %v1548 = vadd.f32 %v1531, %v1532
  %v1549 = vadd.f32 %v1548, %v1533
  %v1550 = vadd.f32 %v1549, %v1534
  %v1551 = vadd.f32 %v1550, %v1535
  %v1552 = vadd.f32 %v1551, %v1536
  %v1553 = vadd.f32 %v1552, %v1537
  %v1554 = vadd.f32 %v1553, %v1538
  %1555 = vadd.xlane.f32.xlu0 %v1554
  %v1556 = vpop.xlane.xlu0 %1555
  %v1557 = vmul.f32 %v1547, 0.0034722222
  %v1558 = vmul.f32 %v1556, 0.0034722222
  %v1559 = vmul.f32 %v1557, %v1557
  %v1560 = vsub.f32 %v1558, %v1559
  %v1561 = vsub.f32 %v1258, %v1557
  %v1562 = vsub.f32 %v1260, %v1557
  %v1563 = vsub.f32 %v1329, %v1557
  %v1564 = vsub.f32 %v1331, %v1557
  %v1565 = vsub.f32 %v1400, %v1557
  %v1566 = vsub.f32 %v1402, %v1557
  %v1567 = vsub.f32 %v1471, %v1557
  %v1568 = vsub.f32 %v1473, %v1557
  %v1569 = vadd.f32 %v1560, 1e-05
  %v1570 = vrsqrt.pop %v1569
  %v1571 = vmul.f32 %v26, %v1570
  %1573 = vset.pattern.permute.xlu0 3
  %1574 = vperm.xlu0 %1573, %v1571
  %v1575 = vpop.permute.xlu0 %1574
  %v1577 = vmul.f32 %v1561, %v1575
  %v1578 = vmul.f32 %v1562, %v1575
  %v1579 = vmul.f32 %v1563, %v1575
  %v1580 = vmul.f32 %v1564, %v1575
  %v1581 = vmul.f32 %v1565, %v1575
  %v1582 = vmul.f32 %v1566, %v1575
  %v1583 = vmul.f32 %v1567, %v1575
  %v1584 = vmul.f32 %v1568, %v1575
  %1585 = vset.pattern.permute.xlu0 4
  %1586 = vperm.xlu0 %1585, %v26
  %v1587 = vpop.permute.xlu0 %1586
  %v1589 = vadd.f32 %v1577, %v1587
  %v1590 = vadd.f32 %v1578, %v1587
  %v1591 = vadd.f32 %v1579, %v1587
  %v1592 = vadd.f32 %v1580, %v1587
  %v1593 = vadd.f32 %v1581, %v1587
  %v1594 = vadd.f32 %v1582, %v1587
  %v1595 = vadd.f32 %v1583, %v1587
  %v1596 = vadd.f32 %v1584, %v1587
  %v1597 = vmax.f32 %v1589, 0.0
  %v1598 = vmax.f32 %v1590, 0.0
  %v1599 = vmax.f32 %v1591, 0.0
  %v1600 = vmax.f32 %v1592, 0.0
  %v1601 = vmax.f32 %v1593, 0.0
  %v1602 = vmax.f32 %v1594, 0.0
  %v1603 = vmax.f32 %v1595, 0.0
  %v1604 = vmax.f32 %v1596, 0.0
  %1605 = vst [vmem:[%s3] sm:$0xff] %v1597
  %1606 = vst [vmem:[%s3 + $0x8] sm:$0xff] %v1598
  %1607 = vst [vmem:[%s3 + $0x10] sm:$0xff] %v1599
  %1608 = vst [vmem:[%s3 + $0x18] sm:$0xff] %v1600
  %1609 = vst [vmem:[%s3 + $0x20] sm:$0xff] %v1601
  %1610 = vst [vmem:[%s3 + $0x28] sm:$0xff] %v1602
  %1611 = vst [vmem:[%s3 + $0x30] sm:$0xff] %v1603
  %1612 = vst [vmem:[%s3 + $0x38] sm:$0xff] %v1604
  // Predicated region
  $region14: #{convblock_forward.1} parent=0 // pred_check
    _
  $region15: #{convblock_forward.1} parent=0 // pred_check_branch
    %1614 = sbr.rel (0) target = $region17
  $region16: #{convblock_forward.1} parent=0 // pred_region
    _
  $region17: #{convblock_forward.1} parent=0 // pred_fallthru
    _
  // Predicated region
  $region18: #{convblock_forward.1} parent=0 // pred_check
    _
  $region19: #{convblock_forward.1} parent=0 // pred_check_branch
    %1616 = sbr.rel (0) target = $region21
  $region20: #{convblock_forward.1} parent=0 // pred_region
    _
  $region21: #{convblock_forward.1} parent=0 // pred_fallthru
    _

</llo_original>
